<compile_context>
chip_gen: v7x
topology: tpu7x:2x2x1
jax: 0.10.0
libtpu: 0.0.40
codegen_flags: <defaults>
</compile_context>

<pallas_src>
import functools

import jax
import jax.numpy as jnp
from jax.experimental import pallas as pl
from jax.experimental.pallas import tpu as pltpu


def _cdiv(a, b):
    return (a + b - 1) // b


def _round_up(x, m):
    return _cdiv(x, m) * m


_TD_MAX = 512    # max dst-row tile
_TS_MAX = 1024   # max src (reduction) tile


def _pick_tiles(num_dst, num_src):
    """Pick (td, d_p, ts, s_p) tile sizes / padded extents for one block."""
    # dst tile: 16-aligned (bf16 sublane pack); aim for >=2 dst tiles so the
    # "parallel" axis can shard across both TensorCores on v7x.
    if num_dst > 16:
        td = min(_TD_MAX, _round_up(_cdiv(num_dst, 2), 16))
    else:
        td = 16
    d_p = _round_up(num_dst, td)
    # src (reduction) tile: lane multiple; padded src extent must cover the
    # padded dst extent because dst features are read out of the same h array.
    ts = min(_TS_MAX, _round_up(num_src, 128))
    s_p = _round_up(max(num_src, d_p), ts)
    return td, d_p, ts, s_p


# --------------------------------------------------------------------------
# Pallas kernel: one fused SAGEConv('mean') layer, tiled over (dst, src)
# --------------------------------------------------------------------------
def _sage_layer_kernel(a_ref, h_ref, hd_ref, ws_ref, wn_ref, b_ref,
                       o_ref, acc_ref, *, apply_relu):
    # a_ref  : (TD, TS)        bf16  row-normalized adjacency tile
    # h_ref  : (TS, Fin_p)     bf16  src-feature reduction slab (indexed by k)
    # hd_ref : (TD, Fin_p)     bf16  dst-node features (same array as h, indexed by i)
    # ws_ref : (Fin_p, Fout_p) bf16  self weight   (resident across whole grid)
    # wn_ref : (Fin_p, Fout_p) bf16  neighbor weight (resident)
    # b_ref  : (1, Fout_p)     f32   bias (resident)
    # o_ref  : (TD, Fout_p)    bf16  output tile (resident across k)
    # acc_ref: (TD, Fin_p)     f32   VMEM accumulator for A @ h
    k = pl.program_id(1)

    @pl.when(k == 0)
    def _init():
        acc_ref[...] = jnp.zeros_like(acc_ref)

    # Partial mean aggregation for this src tile, accumulated exactly in f32.
    acc_ref[...] += jnp.dot(a_ref[...], h_ref[...],
                            preferred_element_type=jnp.float32)

    @pl.when(k == pl.num_programs(1) - 1)
    def _finalize():
        # Single bf16 cast of the fully-accumulated neighbor aggregate, then one
        # projection pass through W_neigh + self term + bias (+ ReLU).
        h_neigh = acc_ref[...].astype(jnp.bfloat16)
        out = (jnp.dot(hd_ref[...], ws_ref[...], preferred_element_type=jnp.float32)
               + jnp.dot(h_neigh, wn_ref[...], preferred_element_type=jnp.float32)
               + b_ref[...])
        if apply_relu:
            out = jnp.maximum(out, 0.0)
        o_ref[...] = out.astype(o_ref.dtype)   # single lane-dense bf16 store


def _sage_layer_padded(a_p, h_p, ws_p, wn_p, b_p, td, ts, apply_relu):
    """One SAGEConv('mean') layer on pre-padded bf16 operands.

    a_p : (d_p, s_p)       bf16   row-normalized adjacency, tile-aligned
    h_p : (s_p, fin_p)     bf16   src features (dst nodes are the first rows)
    ws_p/wn_p : (fin_p, fout_p) bf16 weights, b_p : (1, fout_p) f32 bias
    returns (d_p, fout_p) bf16.
    """
    d_p, s_p = a_p.shape
    fin_p = h_p.shape[1]
    fout_p = ws_p.shape[1]
    grid = (d_p // td, s_p // ts)

    kernel = functools.partial(_sage_layer_kernel, apply_relu=apply_relu)

    n_dst_tiles = d_p // td
    flops = 2 * d_p * s_p * fin_p + 4 * d_p * fin_p * fout_p
    bytes_accessed = (
        2 * d_p * s_p                       # A (bf16), read once
        + 2 * n_dst_tiles * s_p * fin_p     # h reduction slab, once per dst tile
        + 2 * d_p * fin_p                   # h dst tiles
        + 2 * 2 * fin_p * fout_p            # W_self + W_neigh (resident, read once)
        + 4 * fout_p                        # bias
        + 2 * d_p * fout_p)                 # bf16 output write

    return pl.pallas_call(
        kernel,
        grid=grid,
        in_specs=[
            pl.BlockSpec((td, ts), lambda i, k: (i, k)),         # A tile
            pl.BlockSpec((ts, fin_p), lambda i, k: (k, 0)),      # h reduction slab
            pl.BlockSpec((td, fin_p), lambda i, k: (i, 0)),      # h dst tile (same array)
            pl.BlockSpec((fin_p, fout_p), lambda i, k: (0, 0)),  # W_self (resident)
            pl.BlockSpec((fin_p, fout_p), lambda i, k: (0, 0)),  # W_neigh (resident)
            pl.BlockSpec((1, fout_p), lambda i, k: (0, 0)),      # bias (resident)
        ],
        out_specs=pl.BlockSpec((td, fout_p), lambda i, k: (i, 0)),
        out_shape=jax.ShapeDtypeStruct((d_p, fout_p), jnp.bfloat16),
        scratch_shapes=[pltpu.VMEM((td, fin_p), jnp.float32)],
        compiler_params=pltpu.CompilerParams(
            dimension_semantics=("parallel", "arbitrary"),
            vmem_limit_bytes=48 * 1024 * 1024),
        cost_estimate=pl.CostEstimate(flops=int(flops), transcendentals=0,
                                      bytes_accessed=int(bytes_accessed)),
    )(a_p, h_p, h_p, ws_p, wn_p, b_p)


# --------------------------------------------------------------------------
# Padding helpers + end-to-end (jitted) forward on padded bf16 tensors
# --------------------------------------------------------------------------
def _fit_rows(h, rows):
    """Resize row count of a padded bf16 feature matrix (cheap, bf16-only)."""
    if h.shape[0] == rows:
        return h
    if h.shape[0] > rows:
        return h[:rows]           # only drops previously-padded rows
    return jnp.pad(h, ((0, rows - h.shape[0]), (0, 0)))


def _pad2(m, r, c):
    if m.shape == (r, c):
        return m
    return jnp.pad(m, ((0, r - m.shape[0]), (0, c - m.shape[1])))


def prepare_block(a):
    """One-time prep of a sampled block: cast the dense row-normalized
    adjacency to bf16 and pad it to tile-aligned shape, so the per-step
    forward never re-reads / re-pads f32 A."""
    num_dst, num_src = a.shape
    td, d_p, ts, s_p = _pick_tiles(num_dst, num_src)
    a_bf = a.astype(jnp.bfloat16)
    if (d_p, s_p) != (num_dst, num_src):
        a_bf = jnp.pad(a_bf, ((0, d_p - num_dst), (0, s_p - num_src)))
    return a_bf, (num_dst, num_src, td, ts)


@functools.partial(jax.jit, static_argnames=("metas", "n_classes"))
def _forward_padded(x, a_pads, params, metas, n_classes):
    """All layers fused into one XLA program; h stays padded bf16 throughout."""
    n_layers = len(params)

    # Cast + pad the input features once (lane-dense columns, ts-aligned rows).
    f_in0 = x.shape[1]
    fin_p0 = _round_up(f_in0, 128)
    s_p0 = a_pads[0].shape[1]
    h = x.astype(jnp.bfloat16)
    h = jnp.pad(h, ((0, s_p0 - h.shape[0]), (0, fin_p0 - f_in0)))

    for i, (a_p, (w_self, w_neigh, bias), meta) in enumerate(
            zip(a_pads, params, metas)):
        _, _, td, ts = meta
        f_in, f_out = w_self.shape
        fin_p = _round_up(f_in, 128)
        fout_p = _round_up(f_out, 128)

        h = _fit_rows(h, a_p.shape[1])                       # bf16, rows only
        ws_p = _pad2(w_self.astype(jnp.bfloat16), fin_p, fout_p)
        wn_p = _pad2(w_neigh.astype(jnp.bfloat16), fin_p, fout_p)
        b_p = _pad2(bias.astype(jnp.float32), 1, fout_p)

        apply_relu = (i != n_layers - 1)
        h = _sage_layer_padded(a_p, h, ws_p, wn_p, b_p, td, ts, apply_relu)
        # TODO(synk): dropout is eval-mode identity here (no RNG dropout in fwd).

    num_dst_last = metas[-1][0]
    return h[:num_dst_last, :n_classes].astype(jnp.float32)


# --------------------------------------------------------------------------
# Glue: parameters, synthetic sampled blocks, forward pass
# --------------------------------------------------------------------------
def calculate_graphsage_flops_full_graph_per_layer(F_in, F_out, num_edges, num_dst):
    n1 = num_dst + num_edges
    n2 = 2 * num_dst + num_edges
    total_flops = 0
    total_flops += 2 * n1 * F_in * F_out
    total_flops += n2 * F_out
    return total_flops / 1e12


def init_dist_sage_params(key, in_feats, n_hidden, n_classes, n_layers):
    dims = [in_feats] + [n_hidden] * (n_layers - 1) + [n_classes]
    params = []
    for i in range(n_layers):
        f_in, f_out = dims[i], dims[i + 1]
        k1, k2, key = jax.random.split(key, 3)
        w_self = 0.1 * jax.random.normal(k1, (f_in, f_out), jnp.float32)
        w_neigh = 0.1 * jax.random.normal(k2, (f_in, f_out), jnp.float32)
        bias = jnp.zeros((1, f_out), jnp.float32)
        params.append((w_self, w_neigh, bias))
    return params


def make_block(key, num_dst, num_src, p=0.3):
    """Dense row-normalized adjacency for a sampled block (dst nodes are the
    first `num_dst` of the `num_src` source nodes, DGL block convention)."""
    mask = (jax.random.uniform(key, (num_dst, num_src)) < p).astype(jnp.float32)
    mask = mask.at[jnp.arange(num_dst), jnp.arange(num_dst)].set(1.0)  # self edge
    num_edges = int(mask.sum())
    deg = jnp.maximum(mask.sum(axis=1, keepdims=True), 1.0)
    a = mask / deg
    return a, num_edges


def dist_sage_forward(blocks, x, params):
    """Mirrors DistSAGE.forward: returns (h, total_flops_tensor)."""
    # TODO(synk): a real DistSAGE block would use sparse neighbor indices
    # (PrefetchScalarGridSpec gather / segment-mean) instead of a dense A.
    a_pads, metas = [], []
    for a, _ in blocks:
        a_p, meta = prepare_block(a)          # one-time bf16 cast + tile padding
        a_pads.append(a_p)
        metas.append(meta)

    n_classes = params[-1][0].shape[1]
    h = _forward_padded(x, tuple(a_pads), tuple(params), tuple(metas), n_classes)

    total_flops = 0.0
    for (a, num_edges), (w_self, _, _) in zip(blocks, params):
        f_in, f_out = w_self.shape
        total_flops += calculate_graphsage_flops_full_graph_per_layer(
            f_in, f_out, num_edges, a.shape[0])
    return h, jnp.asarray(total_flops, dtype=jnp.float32)


def dist_sage_reference(blocks, x, params):
    """Pure-JAX f32 reference of the same forward pass."""
    h = x
    n_layers = len(params)
    for i, ((a, _), (w_self, w_neigh, bias)) in enumerate(zip(blocks, params)):
        h_dst = h[:a.shape[0]]
        h_neigh = a @ h
        h = h_dst @ w_self + h_neigh @ w_neigh + bias
        if i != n_layers - 1:
            h = jnp.maximum(h, 0.0)
    return h


if __name__ == "__main__":
    key = jax.random.PRNGKey(0)
    k_params, k_x, k_b0, k_b1, k_b2 = jax.random.split(key, 5)

    # Small model / graph consistent with DistSAGE(in_feats, n_hidden, n_classes, 3, relu, p)
    in_feats, n_hidden, n_classes, n_layers = 32, 64, 16, 3
    num_src = [64, 32, 16]   # source nodes per block
    num_dst = [32, 16, 8]    # destination nodes per block (src of next block)

    params = init_dist_sage_params(k_params, in_feats, n_hidden, n_classes, n_layers)
    blocks = [make_block(k, d, s) for k, d, s in
              zip([k_b0, k_b1, k_b2], num_dst, num_src)]
    x = jax.random.normal(k_x, (num_src[0], in_feats), jnp.float32)

    h, flops = dist_sage_forward(blocks, x, params)
    jax.block_until_ready(h)
    jax.block_until_ready(flops)

    assert h.shape == (num_dst[-1], n_classes)

    # correctness vs. pure-JAX f32 reference (bf16 operands -> loose tolerance)
    h_ref = dist_sage_reference(blocks, x, params)
    max_err = float(jnp.max(jnp.abs(h - h_ref)))
    assert max_err < 5e-2, f"mismatch vs reference: max abs err = {max_err}"

    print("KERNEL_OK")
</pallas_src>

<mosaic_0001>
module attributes {stable_mosaic.version = 11 : i64} {
  func.func @_sage_layer_kernel(%arg0: i32, %arg1: i32, %arg2: memref<16x128xbf16, #tpu.memory_space<vmem>>, %arg3: memref<128x128xbf16, #tpu.memory_space<vmem>>, %arg4: memref<16x128xbf16, #tpu.memory_space<vmem>>, %arg5: memref<128x128xbf16, #tpu.memory_space<vmem>>, %arg6: memref<128x128xbf16, #tpu.memory_space<vmem>>, %arg7: memref<1x128xf32, #tpu.memory_space<vmem>>, %arg8: memref<16x128xbf16, #tpu.memory_space<vmem>>, %arg9: memref<16x128xf32, #tpu.memory_space<vmem>>) attributes {dimension_semantics = [#tpu.dimension_semantics<parallel>, #tpu.dimension_semantics<arbitrary>], iteration_bounds = array<i64: 2, 1>, scalar_prefetch = 0 : i64, scratch_operands = 1 : i64, tpu.core_type = #tpu.core_type<tc>, window_params = [{transform_indices = @transform_0, window_bounds = array<i64: 16, 128>}, {transform_indices = @transform_1, window_bounds = array<i64: 128, 128>}, {transform_indices = @transform_2, window_bounds = array<i64: 16, 128>}, {pipeline_mode = #tpu.pipeline_mode<synchronous>, transform_indices = @transform_3, window_bounds = array<i64: 128, 128>}, {pipeline_mode = #tpu.pipeline_mode<synchronous>, transform_indices = @transform_4, window_bounds = array<i64: 128, 128>}, {pipeline_mode = #tpu.pipeline_mode<synchronous>, transform_indices = @transform_5, window_bounds = array<i64: 1, 128>}, {transform_indices = @transform_6, window_bounds = array<i64: 16, 128>}]} {
    %c0_i32 = arith.constant 0 : i32
    %0 = arith.cmpi eq, %arg1, %c0_i32 : i32
    %1 = arith.extui %0 : i1 to i32
    %c0_i32_0 = arith.constant 0 : i32
    %2 = arith.cmpi ne, %1, %c0_i32_0 : i32
    scf.if %2 {
      %cst_10 = arith.constant 0.000000e+00 : f32
      %12 = vector.broadcast %cst_10 : f32 to vector<16x128xf32>
      %c0_11 = arith.constant 0 : index
      %c0_12 = arith.constant 0 : index
      %13 = vector.load %arg9[%c0_11, %c0_12] : memref<16x128xf32, #tpu.memory_space<vmem>>, vector<16x128xf32>
      tpu.vector_store %arg9[%c0_11, %c0_12], %12 {strides = array<i32>} : memref<16x128xf32, #tpu.memory_space<vmem>>, vector<16x128xf32>,
    } else {
    }
    %c0 = arith.constant 0 : index
    %c0_1 = arith.constant 0 : index
    %3 = vector.load %arg9[%c0, %c0_1] : memref<16x128xf32, #tpu.memory_space<vmem>>, vector<16x128xf32>
    %c0_2 = arith.constant 0 : index
    %c0_3 = arith.constant 0 : index
    %4 = vector.load %arg2[%c0_2, %c0_3] : memref<16x128xbf16, #tpu.memory_space<vmem>>, vector<16x128xbf16>
    %c0_4 = arith.constant 0 : index
    %c0_5 = arith.constant 0 : index
    %5 = vector.load %arg3[%c0_4, %c0_5] : memref<128x128xbf16, #tpu.memory_space<vmem>>, vector<128x128xbf16>
    %cst = arith.constant dense<0.000000e+00> : vector<16x128xf32>
    %6 = tpu.matmul %4, %5, %cst {dimension_numbers = #tpu.dot_dimension_numbers<[1], [0], [0], [1], [0, 0, 1, 1], [], []>} : vector<16x128xbf16>, vector<128x128xbf16>, vector<16x128xf32> -> vector<16x128xf32>
    %7 = arith.addf %3, %6 : vector<16x128xf32>
    %c0_6 = arith.constant 0 : index
    %c0_7 = arith.constant 0 : index
    %8 = vector.load %arg9[%c0_6, %c0_7] : memref<16x128xf32, #tpu.memory_space<vmem>>, vector<16x128xf32>
    tpu.vector_store %arg9[%c0_6, %c0_7], %7 {strides = array<i32>} : memref<16x128xf32, #tpu.memory_space<vmem>>, vector<16x128xf32>,
    %c0_i32_8 = arith.constant 0 : i32
    %9 = arith.cmpi eq, %arg1, %c0_i32_8 : i32
    %10 = arith.extui %9 : i1 to i32
    %c0_i32_9 = arith.constant 0 : i32
    %11 = arith.cmpi ne, %10, %c0_i32_9 : i32
    scf.if %11 {
      %c0_10 = arith.constant 0 : index
      %c0_11 = arith.constant 0 : index
      %12 = vector.load %arg9[%c0_10, %c0_11] : memref<16x128xf32, #tpu.memory_space<vmem>>, vector<16x128xf32>
      %13 = arith.truncf %12 : vector<16x128xf32> to vector<16x128xbf16>
      %c0_12 = arith.constant 0 : index
      %c0_13 = arith.constant 0 : index
      %14 = vector.load %arg4[%c0_12, %c0_13] : memref<16x128xbf16, #tpu.memory_space<vmem>>, vector<16x128xbf16>
      %c0_14 = arith.constant 0 : index
      %c0_15 = arith.constant 0 : index
      %15 = vector.load %arg5[%c0_14, %c0_15] : memref<128x128xbf16, #tpu.memory_space<vmem>>, vector<128x128xbf16>
      %cst_16 = arith.constant dense<0.000000e+00> : vector<16x128xf32>
      %16 = tpu.matmul %14, %15, %cst_16 {dimension_numbers = #tpu.dot_dimension_numbers<[1], [0], [0], [1], [0, 0, 1, 1], [], []>} : vector<16x128xbf16>, vector<128x128xbf16>, vector<16x128xf32> -> vector<16x128xf32>
      %c0_17 = arith.constant 0 : index
      %c0_18 = arith.constant 0 : index
      %17 = vector.load %arg6[%c0_17, %c0_18] : memref<128x128xbf16, #tpu.memory_space<vmem>>, vector<128x128xbf16>
      %cst_19 = arith.constant dense<0.000000e+00> : vector<16x128xf32>
      %18 = tpu.matmul %13, %17, %cst_19 {dimension_numbers = #tpu.dot_dimension_numbers<[1], [0], [0], [1], [0, 0, 1, 1], [], []>} : vector<16x128xbf16>, vector<128x128xbf16>, vector<16x128xf32> -> vector<16x128xf32>
      %19 = arith.addf %16, %18 : vector<16x128xf32>
      %c0_20 = arith.constant 0 : index
      %c0_21 = arith.constant 0 : index
      %20 = vector.load %arg7[%c0_20, %c0_21] : memref<1x128xf32, #tpu.memory_space<vmem>>, vector<1x128xf32>
      %21 = vector.broadcast %20 : vector<1x128xf32> to vector<16x128xf32>
      %22 = arith.addf %19, %21 : vector<16x128xf32>
      %cst_22 = arith.constant 0.000000e+00 : f32
      %23 = vector.broadcast %cst_22 : f32 to vector<16x128xf32>
      %24 = arith.maximumf %22, %23 : vector<16x128xf32>
      %25 = arith.truncf %24 : vector<16x128xf32> to vector<16x128xbf16>
      %c0_23 = arith.constant 0 : index
      %c0_24 = arith.constant 0 : index
      %26 = vector.load %arg8[%c0_23, %c0_24] : memref<16x128xbf16, #tpu.memory_space<vmem>>, vector<16x128xbf16>
      tpu.vector_store %arg8[%c0_23, %c0_24], %25 {strides = array<i32>} : memref<16x128xbf16, #tpu.memory_space<vmem>>, vector<16x128xbf16>,
    } else {
    }
    return
  }
  func.func @transform_0(%arg0: i32, %arg1: i32) -> (i32, i32) {
    %c0_i32 = arith.constant 0 : i32
    return %arg0, %arg1 : i32, i32
  }
  func.func @transform_1(%arg0: i32, %arg1: i32) -> (i32, i32) {
    %c0_i32 = arith.constant 0 : i32
    %c0_i32_0 = arith.constant 0 : i32
    return %arg1, %c0_i32 : i32, i32
  }
  func.func @transform_2(%arg0: i32, %arg1: i32) -> (i32, i32) {
    %c0_i32 = arith.constant 0 : i32
    %c0_i32_0 = arith.constant 0 : i32
    return %arg0, %c0_i32 : i32, i32
  }
  func.func @transform_3(%arg0: i32, %arg1: i32) -> (i32, i32) {
    %c0_i32 = arith.constant 0 : i32
    %c0_i32_0 = arith.constant 0 : i32
    %c0_i32_1 = arith.constant 0 : i32
    return %c0_i32, %c0_i32_0 : i32, i32
  }
  func.func @transform_4(%arg0: i32, %arg1: i32) -> (i32, i32) {
    %c0_i32 = arith.constant 0 : i32
    %c0_i32_0 = arith.constant 0 : i32
    %c0_i32_1 = arith.constant 0 : i32
    return %c0_i32, %c0_i32_0 : i32, i32
  }
  func.func @transform_5(%arg0: i32, %arg1: i32) -> (i32, i32) {
    %c0_i32 = arith.constant 0 : i32
    %c0_i32_0 = arith.constant 0 : i32
    %c0_i32_1 = arith.constant 0 : i32
    return %c0_i32, %c0_i32_0 : i32, i32
  }
  func.func @transform_6(%arg0: i32, %arg1: i32) -> (i32, i32) {
    %c0_i32 = arith.constant 0 : i32
    %c0_i32_0 = arith.constant 0 : i32
    return %arg0, %c0_i32 : i32, i32
  }
}

module attributes {stable_mosaic.version = 11 : i64} {
  func.func @_sage_layer_kernel(%arg0: i32, %arg1: i32, %arg2: memref<16x128xbf16, #tpu.memory_space<vmem>>, %arg3: memref<128x128xbf16, #tpu.memory_space<vmem>>, %arg4: memref<16x128xbf16, #tpu.memory_space<vmem>>, %arg5: memref<128x128xbf16, #tpu.memory_space<vmem>>, %arg6: memref<128x128xbf16, #tpu.memory_space<vmem>>, %arg7: memref<1x128xf32, #tpu.memory_space<vmem>>, %arg8: memref<16x128xbf16, #tpu.memory_space<vmem>>, %arg9: memref<16x128xf32, #tpu.memory_space<vmem>>) attributes {dimension_semantics = [#tpu.dimension_semantics<parallel>, #tpu.dimension_semantics<arbitrary>], iteration_bounds = array<i64: 1, 1>, scalar_prefetch = 0 : i64, scratch_operands = 1 : i64, tpu.core_type = #tpu.core_type<tc>, window_params = [{transform_indices = @transform_0, window_bounds = array<i64: 16, 128>}, {transform_indices = @transform_1, window_bounds = array<i64: 128, 128>}, {transform_indices = @transform_2, window_bounds = array<i64: 16, 128>}, {pipeline_mode = #tpu.pipeline_mode<synchronous>, transform_indices = @transform_3, window_bounds = array<i64: 128, 128>}, {pipeline_mode = #tpu.pipeline_mode<synchronous>, transform_indices = @transform_4, window_bounds = array<i64: 128, 128>}, {pipeline_mode = #tpu.pipeline_mode<synchronous>, transform_indices = @transform_5, window_bounds = array<i64: 1, 128>}, {transform_indices = @transform_6, window_bounds = array<i64: 16, 128>}]} {
    %c0_i32 = arith.constant 0 : i32
    %0 = arith.cmpi eq, %arg1, %c0_i32 : i32
    %1 = arith.extui %0 : i1 to i32
    %c0_i32_0 = arith.constant 0 : i32
    %2 = arith.cmpi ne, %1, %c0_i32_0 : i32
    scf.if %2 {
      %cst_10 = arith.constant 0.000000e+00 : f32
      %12 = vector.broadcast %cst_10 : f32 to vector<16x128xf32>
      %c0_11 = arith.constant 0 : index
      %c0_12 = arith.constant 0 : index
      %13 = vector.load %arg9[%c0_11, %c0_12] : memref<16x128xf32, #tpu.memory_space<vmem>>, vector<16x128xf32>
      tpu.vector_store %arg9[%c0_11, %c0_12], %12 {strides = array<i32>} : memref<16x128xf32, #tpu.memory_space<vmem>>, vector<16x128xf32>,
    } else {
    }
    %c0 = arith.constant 0 : index
    %c0_1 = arith.constant 0 : index
    %3 = vector.load %arg9[%c0, %c0_1] : memref<16x128xf32, #tpu.memory_space<vmem>>, vector<16x128xf32>
    %c0_2 = arith.constant 0 : index
    %c0_3 = arith.constant 0 : index
    %4 = vector.load %arg2[%c0_2, %c0_3] : memref<16x128xbf16, #tpu.memory_space<vmem>>, vector<16x128xbf16>
    %c0_4 = arith.constant 0 : index
    %c0_5 = arith.constant 0 : index
    %5 = vector.load %arg3[%c0_4, %c0_5] : memref<128x128xbf16, #tpu.memory_space<vmem>>, vector<128x128xbf16>
    %cst = arith.constant dense<0.000000e+00> : vector<16x128xf32>
    %6 = tpu.matmul %4, %5, %cst {dimension_numbers = #tpu.dot_dimension_numbers<[1], [0], [0], [1], [0, 0, 1, 1], [], []>} : vector<16x128xbf16>, vector<128x128xbf16>, vector<16x128xf32> -> vector<16x128xf32>
    %7 = arith.addf %3, %6 : vector<16x128xf32>
    %c0_6 = arith.constant 0 : index
    %c0_7 = arith.constant 0 : index
    %8 = vector.load %arg9[%c0_6, %c0_7] : memref<16x128xf32, #tpu.memory_space<vmem>>, vector<16x128xf32>
    tpu.vector_store %arg9[%c0_6, %c0_7], %7 {strides = array<i32>} : memref<16x128xf32, #tpu.memory_space<vmem>>, vector<16x128xf32>,
    %c0_i32_8 = arith.constant 0 : i32
    %9 = arith.cmpi eq, %arg1, %c0_i32_8 : i32
    %10 = arith.extui %9 : i1 to i32
    %c0_i32_9 = arith.constant 0 : i32
    %11 = arith.cmpi ne, %10, %c0_i32_9 : i32
    scf.if %11 {
      %c0_10 = arith.constant 0 : index
      %c0_11 = arith.constant 0 : index
      %12 = vector.load %arg9[%c0_10, %c0_11] : memref<16x128xf32, #tpu.memory_space<vmem>>, vector<16x128xf32>
      %13 = arith.truncf %12 : vector<16x128xf32> to vector<16x128xbf16>
      %c0_12 = arith.constant 0 : index
      %c0_13 = arith.constant 0 : index
      %14 = vector.load %arg4[%c0_12, %c0_13] : memref<16x128xbf16, #tpu.memory_space<vmem>>, vector<16x128xbf16>
      %c0_14 = arith.constant 0 : index
      %c0_15 = arith.constant 0 : index
      %15 = vector.load %arg5[%c0_14, %c0_15] : memref<128x128xbf16, #tpu.memory_space<vmem>>, vector<128x128xbf16>
      %cst_16 = arith.constant dense<0.000000e+00> : vector<16x128xf32>
      %16 = tpu.matmul %14, %15, %cst_16 {dimension_numbers = #tpu.dot_dimension_numbers<[1], [0], [0], [1], [0, 0, 1, 1], [], []>} : vector<16x128xbf16>, vector<128x128xbf16>, vector<16x128xf32> -> vector<16x128xf32>
      %c0_17 = arith.constant 0 : index
      %c0_18 = arith.constant 0 : index
      %17 = vector.load %arg6[%c0_17, %c0_18] : memref<128x128xbf16, #tpu.memory_space<vmem>>, vector<128x128xbf16>
      %cst_19 = arith.constant dense<0.000000e+00> : vector<16x128xf32>
      %18 = tpu.matmul %13, %17, %cst_19 {dimension_numbers = #tpu.dot_dimension_numbers<[1], [0], [0], [1], [0, 0, 1, 1], [], []>} : vector<16x128xbf16>, vector<128x128xbf16>, vector<16x128xf32> -> vector<16x128xf32>
      %19 = arith.addf %16, %18 : vector<16x128xf32>
      %c0_20 = arith.constant 0 : index
      %c0_21 = arith.constant 0 : index
      %20 = vector.load %arg7[%c0_20, %c0_21] : memref<1x128xf32, #tpu.memory_space<vmem>>, vector<1x128xf32>
      %21 = vector.broadcast %20 : vector<1x128xf32> to vector<16x128xf32>
      %22 = arith.addf %19, %21 : vector<16x128xf32>
      %cst_22 = arith.constant 0.000000e+00 : f32
      %23 = vector.broadcast %cst_22 : f32 to vector<16x128xf32>
      %24 = arith.maximumf %22, %23 : vector<16x128xf32>
      %25 = arith.truncf %24 : vector<16x128xf32> to vector<16x128xbf16>
      %c0_23 = arith.constant 0 : index
      %c0_24 = arith.constant 0 : index
      %26 = vector.load %arg8[%c0_23, %c0_24] : memref<16x128xbf16, #tpu.memory_space<vmem>>, vector<16x128xbf16>
      tpu.vector_store %arg8[%c0_23, %c0_24], %25 {strides = array<i32>} : memref<16x128xbf16, #tpu.memory_space<vmem>>, vector<16x128xbf16>,
    } else {
    }
    return
  }
  func.func @transform_0(%arg0: i32, %arg1: i32) -> (i32, i32) {
    %c0_i32 = arith.constant 0 : i32
    return %arg0, %arg1 : i32, i32
  }
  func.func @transform_1(%arg0: i32, %arg1: i32) -> (i32, i32) {
    %c0_i32 = arith.constant 0 : i32
    %c0_i32_0 = arith.constant 0 : i32
    return %arg1, %c0_i32 : i32, i32
  }
  func.func @transform_2(%arg0: i32, %arg1: i32) -> (i32, i32) {
    %c0_i32 = arith.constant 0 : i32
    %c0_i32_0 = arith.constant 0 : i32
    return %arg0, %c0_i32 : i32, i32
  }
  func.func @transform_3(%arg0: i32, %arg1: i32) -> (i32, i32) {
    %c0_i32 = arith.constant 0 : i32
    %c0_i32_0 = arith.constant 0 : i32
    %c0_i32_1 = arith.constant 0 : i32
    return %c0_i32, %c0_i32_0 : i32, i32
  }
  func.func @transform_4(%arg0: i32, %arg1: i32) -> (i32, i32) {
    %c0_i32 = arith.constant 0 : i32
    %c0_i32_0 = arith.constant 0 : i32
    %c0_i32_1 = arith.constant 0 : i32
    return %c0_i32, %c0_i32_0 : i32, i32
  }
  func.func @transform_5(%arg0: i32, %arg1: i32) -> (i32, i32) {
    %c0_i32 = arith.constant 0 : i32
    %c0_i32_0 = arith.constant 0 : i32
    %c0_i32_1 = arith.constant 0 : i32
    return %c0_i32, %c0_i32_0 : i32, i32
  }
  func.func @transform_6(%arg0: i32, %arg1: i32) -> (i32, i32) {
    %c0_i32 = arith.constant 0 : i32
    %c0_i32_0 = arith.constant 0 : i32
    return %arg0, %c0_i32 : i32, i32
  }
}

module attributes {stable_mosaic.version = 11 : i64} {
  func.func @_sage_layer_kernel(%arg0: i32, %arg1: i32, %arg2: memref<16x128xbf16, #tpu.memory_space<vmem>>, %arg3: memref<128x128xbf16, #tpu.memory_space<vmem>>, %arg4: memref<16x128xbf16, #tpu.memory_space<vmem>>, %arg5: memref<128x128xbf16, #tpu.memory_space<vmem>>, %arg6: memref<128x128xbf16, #tpu.memory_space<vmem>>, %arg7: memref<1x128xf32, #tpu.memory_space<vmem>>, %arg8: memref<16x128xbf16, #tpu.memory_space<vmem>>, %arg9: memref<16x128xf32, #tpu.memory_space<vmem>>) attributes {dimension_semantics = [#tpu.dimension_semantics<parallel>, #tpu.dimension_semantics<arbitrary>], iteration_bounds = array<i64: 1, 1>, scalar_prefetch = 0 : i64, scratch_operands = 1 : i64, tpu.core_type = #tpu.core_type<tc>, window_params = [{transform_indices = @transform_0, window_bounds = array<i64: 16, 128>}, {transform_indices = @transform_1, window_bounds = array<i64: 128, 128>}, {transform_indices = @transform_2, window_bounds = array<i64: 16, 128>}, {pipeline_mode = #tpu.pipeline_mode<synchronous>, transform_indices = @transform_3, window_bounds = array<i64: 128, 128>}, {pipeline_mode = #tpu.pipeline_mode<synchronous>, transform_indices = @transform_4, window_bounds = array<i64: 128, 128>}, {pipeline_mode = #tpu.pipeline_mode<synchronous>, transform_indices = @transform_5, window_bounds = array<i64: 1, 128>}, {transform_indices = @transform_6, window_bounds = array<i64: 16, 128>}]} {
    %c0_i32 = arith.constant 0 : i32
    %0 = arith.cmpi eq, %arg1, %c0_i32 : i32
    %1 = arith.extui %0 : i1 to i32
    %c0_i32_0 = arith.constant 0 : i32
    %2 = arith.cmpi ne, %1, %c0_i32_0 : i32
    scf.if %2 {
      %cst_10 = arith.constant 0.000000e+00 : f32
      %12 = vector.broadcast %cst_10 : f32 to vector<16x128xf32>
      %c0_11 = arith.constant 0 : index
      %c0_12 = arith.constant 0 : index
      %13 = vector.load %arg9[%c0_11, %c0_12] : memref<16x128xf32, #tpu.memory_space<vmem>>, vector<16x128xf32>
      tpu.vector_store %arg9[%c0_11, %c0_12], %12 {strides = array<i32>} : memref<16x128xf32, #tpu.memory_space<vmem>>, vector<16x128xf32>,
    } else {
    }
    %c0 = arith.constant 0 : index
    %c0_1 = arith.constant 0 : index
    %3 = vector.load %arg9[%c0, %c0_1] : memref<16x128xf32, #tpu.memory_space<vmem>>, vector<16x128xf32>
    %c0_2 = arith.constant 0 : index
    %c0_3 = arith.constant 0 : index
    %4 = vector.load %arg2[%c0_2, %c0_3] : memref<16x128xbf16, #tpu.memory_space<vmem>>, vector<16x128xbf16>
    %c0_4 = arith.constant 0 : index
    %c0_5 = arith.constant 0 : index
    %5 = vector.load %arg3[%c0_4, %c0_5] : memref<128x128xbf16, #tpu.memory_space<vmem>>, vector<128x128xbf16>
    %cst = arith.constant dense<0.000000e+00> : vector<16x128xf32>
    %6 = tpu.matmul %4, %5, %cst {dimension_numbers = #tpu.dot_dimension_numbers<[1], [0], [0], [1], [0, 0, 1, 1], [], []>} : vector<16x128xbf16>, vector<128x128xbf16>, vector<16x128xf32> -> vector<16x128xf32>
    %7 = arith.addf %3, %6 : vector<16x128xf32>
    %c0_6 = arith.constant 0 : index
    %c0_7 = arith.constant 0 : index
    %8 = vector.load %arg9[%c0_6, %c0_7] : memref<16x128xf32, #tpu.memory_space<vmem>>, vector<16x128xf32>
    tpu.vector_store %arg9[%c0_6, %c0_7], %7 {strides = array<i32>} : memref<16x128xf32, #tpu.memory_space<vmem>>, vector<16x128xf32>,
    %c0_i32_8 = arith.constant 0 : i32
    %9 = arith.cmpi eq, %arg1, %c0_i32_8 : i32
    %10 = arith.extui %9 : i1 to i32
    %c0_i32_9 = arith.constant 0 : i32
    %11 = arith.cmpi ne, %10, %c0_i32_9 : i32
    scf.if %11 {
      %c0_10 = arith.constant 0 : index
      %c0_11 = arith.constant 0 : index
      %12 = vector.load %arg9[%c0_10, %c0_11] : memref<16x128xf32, #tpu.memory_space<vmem>>, vector<16x128xf32>
      %13 = arith.truncf %12 : vector<16x128xf32> to vector<16x128xbf16>
      %c0_12 = arith.constant 0 : index
      %c0_13 = arith.constant 0 : index
      %14 = vector.load %arg4[%c0_12, %c0_13] : memref<16x128xbf16, #tpu.memory_space<vmem>>, vector<16x128xbf16>
      %c0_14 = arith.constant 0 : index
      %c0_15 = arith.constant 0 : index
      %15 = vector.load %arg5[%c0_14, %c0_15] : memref<128x128xbf16, #tpu.memory_space<vmem>>, vector<128x128xbf16>
      %cst_16 = arith.constant dense<0.000000e+00> : vector<16x128xf32>
      %16 = tpu.matmul %14, %15, %cst_16 {dimension_numbers = #tpu.dot_dimension_numbers<[1], [0], [0], [1], [0, 0, 1, 1], [], []>} : vector<16x128xbf16>, vector<128x128xbf16>, vector<16x128xf32> -> vector<16x128xf32>
      %c0_17 = arith.constant 0 : index
      %c0_18 = arith.constant 0 : index
      %17 = vector.load %arg6[%c0_17, %c0_18] : memref<128x128xbf16, #tpu.memory_space<vmem>>, vector<128x128xbf16>
      %cst_19 = arith.constant dense<0.000000e+00> : vector<16x128xf32>
      %18 = tpu.matmul %13, %17, %cst_19 {dimension_numbers = #tpu.dot_dimension_numbers<[1], [0], [0], [1], [0, 0, 1, 1], [], []>} : vector<16x128xbf16>, vector<128x128xbf16>, vector<16x128xf32> -> vector<16x128xf32>
      %19 = arith.addf %16, %18 : vector<16x128xf32>
      %c0_20 = arith.constant 0 : index
      %c0_21 = arith.constant 0 : index
      %20 = vector.load %arg7[%c0_20, %c0_21] : memref<1x128xf32, #tpu.memory_space<vmem>>, vector<1x128xf32>
      %21 = vector.broadcast %20 : vector<1x128xf32> to vector<16x128xf32>
      %22 = arith.addf %19, %21 : vector<16x128xf32>
      %23 = arith.truncf %22 : vector<16x128xf32> to vector<16x128xbf16>
      %c0_22 = arith.constant 0 : index
      %c0_23 = arith.constant 0 : index
      %24 = vector.load %arg8[%c0_22, %c0_23] : memref<16x128xbf16, #tpu.memory_space<vmem>>, vector<16x128xbf16>
      tpu.vector_store %arg8[%c0_22, %c0_23], %23 {strides = array<i32>} : memref<16x128xbf16, #tpu.memory_space<vmem>>, vector<16x128xbf16>,
    } else {
    }
    return
  }
  func.func @transform_0(%arg0: i32, %arg1: i32) -> (i32, i32) {
    %c0_i32 = arith.constant 0 : i32
    return %arg0, %arg1 : i32, i32
  }
  func.func @transform_1(%arg0: i32, %arg1: i32) -> (i32, i32) {
    %c0_i32 = arith.constant 0 : i32
    %c0_i32_0 = arith.constant 0 : i32
    return %arg1, %c0_i32 : i32, i32
  }
  func.func @transform_2(%arg0: i32, %arg1: i32) -> (i32, i32) {
    %c0_i32 = arith.constant 0 : i32
    %c0_i32_0 = arith.constant 0 : i32
    return %arg0, %c0_i32 : i32, i32
  }
  func.func @transform_3(%arg0: i32, %arg1: i32) -> (i32, i32) {
    %c0_i32 = arith.constant 0 : i32
    %c0_i32_0 = arith.constant 0 : i32
    %c0_i32_1 = arith.constant 0 : i32
    return %c0_i32, %c0_i32_0 : i32, i32
  }
  func.func @transform_4(%arg0: i32, %arg1: i32) -> (i32, i32) {
    %c0_i32 = arith.constant 0 : i32
    %c0_i32_0 = arith.constant 0 : i32
    %c0_i32_1 = arith.constant 0 : i32
    return %c0_i32, %c0_i32_0 : i32, i32
  }
  func.func @transform_5(%arg0: i32, %arg1: i32) -> (i32, i32) {
    %c0_i32 = arith.constant 0 : i32
    %c0_i32_0 = arith.constant 0 : i32
    %c0_i32_1 = arith.constant 0 : i32
    return %c0_i32, %c0_i32_0 : i32, i32
  }
  func.func @transform_6(%arg0: i32, %arg1: i32) -> (i32, i32) {
    %c0_i32 = arith.constant 0 : i32
    %c0_i32_0 = arith.constant 0 : i32
    return %arg0, %c0_i32 : i32, i32
  }
}

</mosaic_0001>

<llo_original>
// kernel: _forward_padded.4
$region0: #{_forward_padded.4}
  #allocation0 [shape = 'u32[]', space=smem, size = 0x4, offset = 0x4, fixed_abs, tag = 'smem constant byte address 0x4 - core index']
  #allocation1 [shape = 'u32[144,128]{1,0:T(1,128)}', space=vmem, size = 0x12000, scoped, tag = 'internal scratch']
  #allocation2 [shape = 'f32[16,128]{1,0:T(8,128)}', space=vmem, size = 0x2000, scoped, tag = 'scratch operand']
  %s0 = inlined_call_operand.vmem [shape: bf16[16,128], index: 0, kind: input, shape index: {}]
  %s1 = inlined_call_operand.vmem [shape: bf16[128,128], index: 1, kind: input, shape index: {}, may-alias: {1,2}]
  %s2 = inlined_call_operand.vmem [shape: bf16[128,128], index: 2, kind: input, shape index: {}, may-alias: {1,2}]
  %s3 = inlined_call_operand.vmem [shape: bf16[128,128], index: 3, kind: input, shape index: {}]
  %s4 = inlined_call_operand.vmem [shape: bf16[128,128], index: 4, kind: input, shape index: {}]
  %s5 = inlined_call_operand.vmem [shape: f32[1,128], index: 5, kind: input, shape index: {}]
  %s6 = inlined_call_operand.vmem [shape: bf16[16,128], index: 6, kind: output, shape index: {}]
  %s7 = sld [smem:[#allocation0]]
  $region42: #{_forward_padded.4} parent=0
    _
  %s9 = ssub.s32 1, %s7
  %s10 = scalar_select 0, %s9, %s7
  // Predicated region
  $region2: #{_forward_padded.4} parent=0 // pred_check
    _
  $region3: #{_forward_padded.4} parent=0 // pred_check_branch
    %12 = sbr.rel (0) target = $region5
  $region4: #{_forward_padded.4} parent=0 // pred_region
    _
  $region5: #{_forward_padded.4} parent=0 // pred_fallthru
    _
  // Predicated region
  $region6: #{_forward_padded.4} parent=0 // pred_check
    _
  $region7: #{_forward_padded.4} parent=0 // pred_check_branch
    %14 = sbr.rel (0) target = $region9
  $region8: #{_forward_padded.4} parent=0 // pred_region
    _
  $region9: #{_forward_padded.4} parent=0 // pred_fallthru
    _
  // Predicated region
  $region10: #{_forward_padded.4} parent=0 // pred_check
    _
  $region11: #{_forward_padded.4} parent=0 // pred_check_branch
    %16 = sbr.rel (0) target = $region13
  $region12: #{_forward_padded.4} parent=0 // pred_region
    _
  $region13: #{_forward_padded.4} parent=0 // pred_fallthru
    _
  // Predicated region
  $region14: #{_forward_padded.4} parent=0 // pred_check
    _
  $region15: #{_forward_padded.4} parent=0 // pred_check_branch
    %18 = sbr.rel (0) target = $region17
  $region16: #{_forward_padded.4} parent=0 // pred_region
    _
  $region17: #{_forward_padded.4} parent=0 // pred_fallthru
    _
  // Predicated region
  $region18: #{_forward_padded.4} parent=0 // pred_check
    _
  $region19: #{_forward_padded.4} parent=0 // pred_check_branch
    %20 = sbr.rel (0) target = $region21
  $region20: #{_forward_padded.4} parent=0 // pred_region
    _
  $region21: #{_forward_padded.4} parent=0 // pred_fallthru
    _
  // Predicated region
  $region22: #{_forward_padded.4} parent=0 // pred_check
    _
  $region23: #{_forward_padded.4} parent=0 // pred_check_branch
    %22 = sbr.rel (0) target = $region25
  $region24: #{_forward_padded.4} parent=0 // pred_region
    _
  $region25: #{_forward_padded.4} parent=0 // pred_fallthru
    _
  %p24 = scmp.eq.s32.totalorder 0, 0
  // Predicated region
  $region26: #{_forward_padded.4} parent=0 // pred_check
    %p25 = pneg %p24
  $region27: #{_forward_padded.4} parent=0 // pred_check_branch
    %27 = sbr.rel (%p25) target = $region29
  $region28: #{_forward_padded.4} parent=0 // pred_region
    %28 = vst [vmem:[#allocation2] sm:$0xff] 0.0
    %29 = vst [vmem:[#allocation2 + $0x8] sm:$0xff] 0.0
  $region29: #{_forward_padded.4} parent=0 // pred_fallthru
    _
  %v30 = vld [vmem:[#allocation2] sm:$0xff]
  %v31 = vld [vmem:[#allocation2 + $0x8] sm:$0xff]
  %v32 = vld [vmem:[%s0] sm:$0xf]
  %v33 = vld [vmem:[%s0 + $0x4] sm:$0xf]
  %v34 = vld [vmem:[%s1] sm:$0xf]
  %v35 = vld [vmem:[%s1 + $0x4] sm:$0xf]
  %v36 = vld [vmem:[%s1 + $0x8] sm:$0xf]
  %v37 = vld [vmem:[%s1 + $0xc] sm:$0xf]
  %v38 = vld [vmem:[%s1 + $0x10] sm:$0xf]
  %v39 = vld [vmem:[%s1 + $0x14] sm:$0xf]
  %v40 = vld [vmem:[%s1 + $0x18] sm:$0xf]
  %v41 = vld [vmem:[%s1 + $0x1c] sm:$0xf]
  %v42 = vld [vmem:[%s1 + $0x20] sm:$0xf]
  %v43 = vld [vmem:[%s1 + $0x24] sm:$0xf]
  %v44 = vld [vmem:[%s1 + $0x28] sm:$0xf]
  %v45 = vld [vmem:[%s1 + $0x2c] sm:$0xf]
  %v46 = vld [vmem:[%s1 + $0x30] sm:$0xf]
  %v47 = vld [vmem:[%s1 + $0x34] sm:$0xf]
  %v48 = vld [vmem:[%s1 + $0x38] sm:$0xf]
  %v49 = vld [vmem:[%s1 + $0x3c] sm:$0xf]
  %v52 = vunpack.c.l.b16 %v32
  %v53 = vunpack.c.l.b16 %v33
  %v54 = vpack.c.b16 %v53, %v52
  %v72 = vunpack.c.l.b16 %v34
  %v73 = vunpack.c.l.b16 %v35
  %v74 = vunpack.c.l.b16 %v36
  %v75 = vunpack.c.l.b16 %v37
  %v76 = vunpack.c.l.b16 %v38
  %v77 = vunpack.c.l.b16 %v39
  %v78 = vunpack.c.l.b16 %v40
  %v79 = vunpack.c.l.b16 %v41
  %v80 = vunpack.c.l.b16 %v42
  %v81 = vunpack.c.l.b16 %v43
  %v82 = vunpack.c.l.b16 %v44
  %v83 = vunpack.c.l.b16 %v45
  %v84 = vunpack.c.l.b16 %v46
  %v85 = vunpack.c.l.b16 %v47
  %v86 = vunpack.c.l.b16 %v48
  %v87 = vunpack.c.l.b16 %v49
  %v88 = vpack.c.b16 %v73, %v72
  %v89 = vpack.c.b16 %v75, %v74
  %v90 = vpack.c.b16 %v77, %v76
  %v91 = vpack.c.b16 %v79, %v78
  %v92 = vpack.c.b16 %v81, %v80
  %v93 = vpack.c.b16 %v83, %v82
  %v94 = vpack.c.b16 %v85, %v84
  %v95 = vpack.c.b16 %v87, %v86
  %104 = vmatprep.subr.bf16.mxu0 0
  %105 = vmatpush1.bf16.msra.mxu0 %v88
  %106 = vmatprep.subr.bf16.mxu0 0
  %107 = vmatpush1.bf16.msra.mxu0 %v89
  %108 = vmatprep.subr.bf16.mxu0 0
  %109 = vmatpush1.bf16.msra.mxu0 %v90
  %110 = vmatprep.subr.bf16.mxu0 0
  %111 = vmatpush1.bf16.msra.mxu0 %v91
  %112 = vmatprep.subr.bf16.mxu0 0
  %113 = vmatpush1.bf16.msra.mxu0 %v92
  %114 = vmatprep.subr.bf16.mxu0 0
  %115 = vmatpush1.bf16.msra.mxu0 %v93
  %116 = vmatprep.subr.bf16.mxu0 0
  %117 = vmatpush1.bf16.msra.mxu0 %v94
  %118 = vmatprep.subr.bf16.mxu0 0
  %119 = vmatpush1.bf16.msra.mxu0 %v95
  %120 = vmatprep.subr.bf16.mxu0 0
  %121 = vmatpush1.bf16.msra.mxu0 0
  %122 = vmatprep.subr.bf16.mxu0 0
  %123 = vmatpush1.bf16.msra.mxu0 0
  %124 = vmatprep.subr.bf16.mxu0 0
  %125 = vmatpush1.bf16.msra.mxu0 0
  %126 = vmatprep.subr.bf16.mxu0 0
  %127 = vmatpush1.bf16.msra.mxu0 0
  %128 = vmatprep.subr.bf16.mxu0 0
  %129 = vmatpush1.bf16.msra.mxu0 0
  %130 = vmatprep.subr.bf16.mxu0 0
  %131 = vmatpush1.bf16.msra.mxu0 0
  %132 = vmatprep.subr.bf16.mxu0 0
  %133 = vmatpush1.bf16.msra.mxu0 0
  %134 = vmatprep.subr.bf16.mxu0 0
  %135 = vmatpush1.bf16.msra.mxu0 0
  %136 = vmatprep.mubr.bf16.mxu0 0
  %137 = vmatmul.mubr.bf16.gmra.mrb[0].mxu0 %v54
  %v138 = vpop.f32.mrb[0].mxu0
  %v139 = vadd.f32 0.0, %v138
  %v140 = vpop.f32.mrb[0].mxu0
  %v141 = vpop.f32.mrb[0].mxu0
  %v142 = vadd.f32 0.0, %v141
  %v143 = vpop.f32.mrb[0].mxu0
  %144 = vdwg.mxu0
  %v145 = vadd.f32 %v30, %v139
  %v146 = vadd.f32 %v31, %v142
  %147 = vst [vmem:[#allocation2] sm:$0xff] %v145
  %148 = vst [vmem:[#allocation2 + $0x8] sm:$0xff] %v146
  // Predicated region
  $region30: #{_forward_padded.4} parent=0 // pred_check
    %p149 = pneg %p24
  $region31: #{_forward_padded.4} parent=0 // pred_check_branch
    %151 = sbr.rel (%p149) target = $region33
  $region32: #{_forward_padded.4} parent=0 // pred_region
    %v152 = vld [vmem:[#allocation2] sm:$0xff]
    %v153 = vld [vmem:[#allocation2 + $0x8] sm:$0xff]
    %v154 = vpack.c.bf16 %v153, %v152
    %v155 = vld [vmem:[%s2] sm:$0xf]
    %v156 = vld [vmem:[%s2 + $0x4] sm:$0xf]
    %v157 = vld [vmem:[%s3] sm:$0xf]
    %v158 = vld [vmem:[%s3 + $0x4] sm:$0xf]
    %v159 = vld [vmem:[%s3 + $0x8] sm:$0xf]
    %v160 = vld [vmem:[%s3 + $0xc] sm:$0xf]
    %v161 = vld [vmem:[%s3 + $0x10] sm:$0xf]
    %v162 = vld [vmem:[%s3 + $0x14] sm:$0xf]
    %v163 = vld [vmem:[%s3 + $0x18] sm:$0xf]
    %v164 = vld [vmem:[%s3 + $0x1c] sm:$0xf]
    %v165 = vld [vmem:[%s3 + $0x20] sm:$0xf]
    %v166 = vld [vmem:[%s3 + $0x24] sm:$0xf]
    %v167 = vld [vmem:[%s3 + $0x28] sm:$0xf]
    %v168 = vld [vmem:[%s3 + $0x2c] sm:$0xf]
    %v169 = vld [vmem:[%s3 + $0x30] sm:$0xf]
    %v170 = vld [vmem:[%s3 + $0x34] sm:$0xf]
    %v171 = vld [vmem:[%s3 + $0x38] sm:$0xf]
    %v172 = vld [vmem:[%s3 + $0x3c] sm:$0xf]
    %v173 = vld [vmem:[%s4] sm:$0xf]
    %v174 = vld [vmem:[%s4 + $0x4] sm:$0xf]
    %v175 = vld [vmem:[%s4 + $0x8] sm:$0xf]
    %v176 = vld [vmem:[%s4 + $0xc] sm:$0xf]
    %v177 = vld [vmem:[%s4 + $0x10] sm:$0xf]
    %v178 = vld [vmem:[%s4 + $0x14] sm:$0xf]
    %v179 = vld [vmem:[%s4 + $0x18] sm:$0xf]
    %v180 = vld [vmem:[%s4 + $0x1c] sm:$0xf]
    %v181 = vld [vmem:[%s4 + $0x20] sm:$0xf]
    %v182 = vld [vmem:[%s4 + $0x24] sm:$0xf]
    %v183 = vld [vmem:[%s4 + $0x28] sm:$0xf]
    %v184 = vld [vmem:[%s4 + $0x2c] sm:$0xf]
    %v185 = vld [vmem:[%s4 + $0x30] sm:$0xf]
    %v186 = vld [vmem:[%s4 + $0x34] sm:$0xf]
    %v187 = vld [vmem:[%s4 + $0x38] sm:$0xf]
    %v188 = vld [vmem:[%s4 + $0x3c] sm:$0xf]
    %v205 = vunpack.c.l.b16 %v173
    %v206 = vunpack.c.l.b16 %v174
    %v207 = vunpack.c.l.b16 %v175
    %v208 = vunpack.c.l.b16 %v176
    %v209 = vunpack.c.l.b16 %v177
    %v210 = vunpack.c.l.b16 %v178
    %v211 = vunpack.c.l.b16 %v179
    %v212 = vunpack.c.l.b16 %v180
    %v213 = vunpack.c.l.b16 %v181
    %v214 = vunpack.c.l.b16 %v182
    %v215 = vunpack.c.l.b16 %v183
    %v216 = vunpack.c.l.b16 %v184
    %v217 = vunpack.c.l.b16 %v185
    %v218 = vunpack.c.l.b16 %v186
    %v219 = vunpack.c.l.b16 %v187
    %v220 = vunpack.c.l.b16 %v188
    %v221 = vpack.c.b16 %v206, %v205
    %v222 = vpack.c.b16 %v208, %v207
    %v223 = vpack.c.b16 %v210, %v209
    %v224 = vpack.c.b16 %v212, %v211
    %v225 = vpack.c.b16 %v214, %v213
    %v226 = vpack.c.b16 %v216, %v215
    %v227 = vpack.c.b16 %v218, %v217
    %v228 = vpack.c.b16 %v220, %v219
    %237 = vmatprep.subr.bf16.mxu0 0
    %238 = vmatpush1.bf16.msra.mxu0 %v221
    %239 = vmatprep.subr.bf16.mxu0 0
    %240 = vmatpush1.bf16.msra.mxu0 %v222
    %241 = vmatprep.subr.bf16.mxu0 0
    %242 = vmatpush1.bf16.msra.mxu0 %v223
    %243 = vmatprep.subr.bf16.mxu0 0
    %244 = vmatpush1.bf16.msra.mxu0 %v224
    %245 = vmatprep.subr.bf16.mxu0 0
    %246 = vmatpush1.bf16.msra.mxu0 %v225
    %247 = vmatprep.subr.bf16.mxu0 0
    %248 = vmatpush1.bf16.msra.mxu0 %v226
    %249 = vmatprep.subr.bf16.mxu0 0
    %250 = vmatpush1.bf16.msra.mxu0 %v227
    %251 = vmatprep.subr.bf16.mxu0 0
    %252 = vmatpush1.bf16.msra.mxu0 %v228
    %253 = vmatprep.subr.bf16.mxu0 0
    %254 = vmatpush1.bf16.msra.mxu0 0
    %255 = vmatprep.subr.bf16.mxu0 0
    %256 = vmatpush1.bf16.msra.mxu0 0
    %257 = vmatprep.subr.bf16.mxu0 0
    %258 = vmatpush1.bf16.msra.mxu0 0
    %259 = vmatprep.subr.bf16.mxu0 0
    %260 = vmatpush1.bf16.msra.mxu0 0
    %261 = vmatprep.subr.bf16.mxu0 0
    %262 = vmatpush1.bf16.msra.mxu0 0
    %263 = vmatprep.subr.bf16.mxu0 0
    %264 = vmatpush1.bf16.msra.mxu0 0
    %265 = vmatprep.subr.bf16.mxu0 0
    %266 = vmatpush1.bf16.msra.mxu0 0
    %267 = vmatprep.subr.bf16.mxu0 0
    %268 = vmatpush1.bf16.msra.mxu0 0
    %269 = vmatprep.mubr.bf16.mxu0 0
    %270 = vmatmul.mubr.bf16.gmra.mrb[0].mxu0 %v154
    %v271 = vpop.f32.mrb[0].mxu0
    %v272 = vadd.f32 0.0, %v271
    %v273 = vpop.f32.mrb[0].mxu0
    %v274 = vpop.f32.mrb[0].mxu0
    %v275 = vadd.f32 0.0, %v274
    %v276 = vpop.f32.mrb[0].mxu0
    %277 = vdwg.mxu0
    %v280 = vunpack.c.l.b16 %v155
    %v281 = vunpack.c.l.b16 %v156
    %v282 = vpack.c.b16 %v281, %v280
    %v300 = vunpack.c.l.b16 %v157
    %v301 = vunpack.c.l.b16 %v158
    %v302 = vunpack.c.l.b16 %v159
    %v303 = vunpack.c.l.b16 %v160
    %v304 = vunpack.c.l.b16 %v161
    %v305 = vunpack.c.l.b16 %v162
    %v306 = vunpack.c.l.b16 %v163
    %v307 = vunpack.c.l.b16 %v164
    %v308 = vunpack.c.l.b16 %v165
    %v309 = vunpack.c.l.b16 %v166
    %v310 = vunpack.c.l.b16 %v167
    %v311 = vunpack.c.l.b16 %v168
    %v312 = vunpack.c.l.b16 %v169
    %v313 = vunpack.c.l.b16 %v170
    %v314 = vunpack.c.l.b16 %v171
    %v315 = vunpack.c.l.b16 %v172
    %v316 = vpack.c.b16 %v301, %v300
    %v317 = vpack.c.b16 %v303, %v302
    %v318 = vpack.c.b16 %v305, %v304
    %v319 = vpack.c.b16 %v307, %v306
    %v320 = vpack.c.b16 %v309, %v308
    %v321 = vpack.c.b16 %v311, %v310
    %v322 = vpack.c.b16 %v313, %v312
    %v323 = vpack.c.b16 %v315, %v314
    %332 = vmatprep.subr.bf16.mxu0 0
    %333 = vmatpush1.bf16.msra.mxu0 %v316
    %334 = vmatprep.subr.bf16.mxu0 0
    %335 = vmatpush1.bf16.msra.mxu0 %v317
    %336 = vmatprep.subr.bf16.mxu0 0
    %337 = vmatpush1.bf16.msra.mxu0 %v318
    %338 = vmatprep.subr.bf16.mxu0 0
    %339 = vmatpush1.bf16.msra.mxu0 %v319
    %340 = vmatprep.subr.bf16.mxu0 0
    %341 = vmatpush1.bf16.msra.mxu0 %v320
    %342 = vmatprep.subr.bf16.mxu0 0
    %343 = vmatpush1.bf16.msra.mxu0 %v321
    %344 = vmatprep.subr.bf16.mxu0 0
    %345 = vmatpush1.bf16.msra.mxu0 %v322
    %346 = vmatprep.subr.bf16.mxu0 0
    %347 = vmatpush1.bf16.msra.mxu0 %v323
    %348 = vmatprep.subr.bf16.mxu0 0
    %349 = vmatpush1.bf16.msra.mxu0 0
    %350 = vmatprep.subr.bf16.mxu0 0
    %351 = vmatpush1.bf16.msra.mxu0 0
    %352 = vmatprep.subr.bf16.mxu0 0
    %353 = vmatpush1.bf16.msra.mxu0 0
    %354 = vmatprep.subr.bf16.mxu0 0
    %355 = vmatpush1.bf16.msra.mxu0 0
    %356 = vmatprep.subr.bf16.mxu0 0
    %357 = vmatpush1.bf16.msra.mxu0 0
    %358 = vmatprep.subr.bf16.mxu0 0
    %359 = vmatpush1.bf16.msra.mxu0 0
    %360 = vmatprep.subr.bf16.mxu0 0
    %361 = vmatpush1.bf16.msra.mxu0 0
    %362 = vmatprep.subr.bf16.mxu0 0
    %363 = vmatpush1.bf16.msra.mxu0 0
    %364 = vmatprep.mubr.bf16.mxu0 0
    %365 = vmatmul.mubr.bf16.gmra.mrb[0].mxu0 %v282
    %v366 = vpop.f32.mrb[0].mxu0
    %v367 = vadd.f32 %v272, %v366
    %v368 = vpop.f32.mrb[0].mxu0
    %v369 = vpop.f32.mrb[0].mxu0
    %v370 = vadd.f32 %v275, %v369
    %v371 = vpop.f32.mrb[0].mxu0
    %372 = vdwg.mxu0
    %v373 = vld [vmem:[%s5] sm:$0x1]
    %v375 = vlaneseq
    %v376 = vshrl.u32 %v375, 7
    %v377 = vsub.s32 0, %v376
    %v378 = vrot.slane %v373, %v377
    %v380 = vadd.f32 %v367, %v378
    %v381 = vadd.f32 %v370, %v378
    %v382 = vmax.f32 %v380, 0.0
    %v383 = vmax.f32 %v381, 0.0
    %v384 = vpack.c.bf16 %v383, %v382
    %v386 = vunpack.c.l.b16 %v384
    %v387 = vunpack.c.h.b16 %v384
    %v388 = vpack.c.b16 %v386, %v386
    %v389 = vpack.c.b16 %v387, %v387
    %392 = vst [vmem:[%s6] sm:$0xf] %v388
    %393 = vst [vmem:[%s6 + $0x4] sm:$0xf] %v389
  $region33: #{_forward_padded.4} parent=0 // pred_fallthru
    _
  // Predicated region
  $region34: #{_forward_padded.4} parent=0 // pred_check
    _
  $region35: #{_forward_padded.4} parent=0 // pred_check_branch
    %395 = sbr.rel (0) target = $region37
  $region36: #{_forward_padded.4} parent=0 // pred_region
    _
  $region37: #{_forward_padded.4} parent=0 // pred_fallthru
    _
  // Predicated region
  $region38: #{_forward_padded.4} parent=0 // pred_check
    _
  $region39: #{_forward_padded.4} parent=0 // pred_check_branch
    %397 = sbr.rel (0) target = $region41
  $region40: #{_forward_padded.4} parent=0 // pred_region
    _
  $region41: #{_forward_padded.4} parent=0 // pred_fallthru
    _

// kernel: _forward_padded.3
$region0: #{_forward_padded.3}
  #allocation0 [shape = 'u32[]', space=smem, size = 0x4, offset = 0x4, fixed_abs, tag = 'smem constant byte address 0x4 - core index']
  #allocation1 [shape = 'u32[144,128]{1,0:T(1,128)}', space=vmem, size = 0x12000, scoped, tag = 'internal scratch']
  #allocation2 [shape = 'f32[16,128]{1,0:T(8,128)}', space=vmem, size = 0x2000, scoped, tag = 'scratch operand']
  %s0 = inlined_call_operand.vmem [shape: bf16[32,128], index: 0, kind: input, shape index: {}]
  %s1 = inlined_call_operand.vmem [shape: bf16[128,128], index: 1, kind: input, shape index: {}, may-alias: {1,2}]
  %s2 = inlined_call_operand.vmem [shape: bf16[128,128], index: 2, kind: input, shape index: {}, may-alias: {1,2}]
  %s3 = inlined_call_operand.vmem [shape: bf16[128,128], index: 3, kind: input, shape index: {}]
  %s4 = inlined_call_operand.vmem [shape: bf16[128,128], index: 4, kind: input, shape index: {}]
  %s5 = inlined_call_operand.vmem [shape: f32[1,128], index: 5, kind: input, shape index: {}]
  %s6 = inlined_call_operand.vmem [shape: bf16[32,128], index: 6, kind: output, shape index: {}]
  %s7 = sld [smem:[#allocation0]]
  $region65: #{_forward_padded.3} parent=0
    _
  %s9 = ssub.s32 1, %s7
  %s10 = scalar_select 0, %s9, %s7
  loop: start=0, step=1, limit=4
  $region2: #{_forward_padded.3} parent=0 // loop_pre_header
    _
  $region3: #{_forward_padded.3} parent=0 // loop_header
    %s12 = sphi 0, %s16
    %p13 = scmp.ge.s32.totalorder %s12, 4
    %s19 = sphi 0, %s31
    %s20 = sphi 0, %s27
    %s21 = sphi 0, %s19
    %s22 = sphi 0, %s20
    %s23 = sphi 0, %s21
    %s24 = sphi 0, %s22
    %s36 = sphi 0, %s38
    %s39 = sphi 0, %s36
    %s40 = sphi 0, %s39
    %s56 = sphi 0, %s40
    %s62 = sphi 0, %s64
    %s65 = sphi 0, %s62
    %s66 = sphi 0, %s65
    %s82 = sphi 0, %s66
    %s88 = sphi 0, %s90
    %s91 = sphi 0, %s88
    %s92 = sphi 0, %s91
    %s108 = sphi 0, %s92
    %s112 = sphi 0, %s112
    %s114 = sphi 0, %s112
    %s115 = sphi 0, %s114
    %s129 = sphi 0, %s115
    %s133 = sphi 0, %s133
    %s135 = sphi 0, %s133
    %s136 = sphi 0, %s135
    %s150 = sphi 0, %s136
    %s154 = sphi 0, %s154
    %s156 = sphi 0, %s154
    %s157 = sphi 0, %s156
    %s171 = sphi 0, %s157
    %s177 = sphi 0, %s179
    %s180 = sphi 0, %s177
    %s181 = sphi 0, %s180
    %s197 = sphi 0, %s181
  $region4: #{_forward_padded.3} parent=0 // loop_header_branch
    %15 = sbr.rel (%p13) target = $region8
  $region5: #{_forward_padded.3} parent=0 // loop_body
    %s17 = ssub.s32 %s12, 1
    %s18 = ssub.s32 %s12, 2
    %s25 = sadd.s32 1, %s20
    %p26 = scmp.ge.s32.totalorder %s25, 1
    %s27 = scalar_select %p26, 0, %s25
    %s28 = sadd.s32 1, %s19
    %s29 = scalar_select %p26, %s28, %s19
    %p30 = scmp.ge.s32.totalorder %s29, 2
    %s31 = scalar_select %p30, 0, %s29
    %s32 = ssub.s32 %s19, %s31
    %s33 = ssub.s32 %s20, %s27
    %s34 = sor.u32 %s32, %s33
    %p35 = scmp.eq.s32.totalorder %s34, 0
    %s37 = sadd.s32 %s36, 1
    %s38 = scalar_select %p35, %s36, %s37
    %p41 = pneg %p35
    %p42 = scmp.eq.s32.totalorder %s12, 1
    %p43 = por %p41, %p42
    %p44 = scmp.ne.s32.totalorder %s36, %s39
    %p45 = scmp.eq.s32.totalorder %s12, 0
    %p46 = por %p44, %p45
    %p47 = scmp.ne.s32.totalorder %s36, %s39
    %p48 = scmp.eq.s32.totalorder %s17, 1
    %p49 = por %p47, %p48
    %p50 = scmp.ne.s32.totalorder %s39, %s40
    %p51 = scmp.eq.s32.totalorder %s17, 0
    %p52 = por %p50, %p51
    %p53 = scmp.ne.s32.totalorder %s39, %s40
    %p54 = scmp.eq.s32.totalorder %s18, 1
    %p55 = por %p53, %p54
    %p57 = scmp.ne.s32.totalorder %s40, %s56
    %p58 = scmp.eq.s32.totalorder %s18, 0
    %p59 = por %p57, %p58
    %s60 = ssub.s32 %s20, %s27
    %p61 = scmp.eq.s32.totalorder %s60, 0
    %s63 = sadd.s32 %s62, 1
    %s64 = scalar_select %p61, %s62, %s63
    %p67 = pneg %p61
    %p68 = scmp.eq.s32.totalorder %s12, 1
    %p69 = por %p67, %p68
    %p70 = scmp.ne.s32.totalorder %s62, %s65
    %p71 = scmp.eq.s32.totalorder %s12, 0
    %p72 = por %p70, %p71
    %p73 = scmp.ne.s32.totalorder %s62, %s65
    %p74 = scmp.eq.s32.totalorder %s17, 1
    %p75 = por %p73, %p74
    %p76 = scmp.ne.s32.totalorder %s65, %s66
    %p77 = scmp.eq.s32.totalorder %s17, 0
    %p78 = por %p76, %p77
    %p79 = scmp.ne.s32.totalorder %s65, %s66
    %p80 = scmp.eq.s32.totalorder %s18, 1
    %p81 = por %p79, %p80
    %p83 = scmp.ne.s32.totalorder %s66, %s82
    %p84 = scmp.eq.s32.totalorder %s18, 0
    %p85 = por %p83, %p84
    %s86 = ssub.s32 %s19, %s31
    %p87 = scmp.eq.s32.totalorder %s86, 0
    %s89 = sadd.s32 %s88, 1
    %s90 = scalar_select %p87, %s88, %s89
    %p93 = pneg %p87
    %p94 = scmp.eq.s32.totalorder %s12, 1
    %p95 = por %p93, %p94
    %p96 = scmp.ne.s32.totalorder %s88, %s91
    %p97 = scmp.eq.s32.totalorder %s12, 0
    %p98 = por %p96, %p97
    %p99 = scmp.ne.s32.totalorder %s88, %s91
    %p100 = scmp.eq.s32.totalorder %s17, 1
    %p101 = por %p99, %p100
    %p102 = scmp.ne.s32.totalorder %s91, %s92
    %p103 = scmp.eq.s32.totalorder %s17, 0
    %p104 = por %p102, %p103
    %p105 = scmp.ne.s32.totalorder %s91, %s92
    %p106 = scmp.eq.s32.totalorder %s18, 1
    %p107 = por %p105, %p106
    %p109 = scmp.ne.s32.totalorder %s92, %s108
    %p110 = scmp.eq.s32.totalorder %s18, 0
    %p111 = por %p109, %p110
    %s113 = sadd.s32 %s112, 1
    %p116 = scmp.eq.s32.totalorder %s12, 1
    %p117 = scmp.ne.s32.totalorder %s112, %s114
    %p118 = scmp.eq.s32.totalorder %s12, 0
    %p119 = por %p117, %p118
    %p120 = scmp.ne.s32.totalorder %s112, %s114
    %p121 = scmp.eq.s32.totalorder %s17, 1
    %p122 = por %p120, %p121
    %p123 = scmp.ne.s32.totalorder %s114, %s115
    %p124 = scmp.eq.s32.totalorder %s17, 0
    %p125 = por %p123, %p124
    %p126 = scmp.ne.s32.totalorder %s114, %s115
    %p127 = scmp.eq.s32.totalorder %s18, 1
    %p128 = por %p126, %p127
    %p130 = scmp.ne.s32.totalorder %s115, %s129
    %p131 = scmp.eq.s32.totalorder %s18, 0
    %p132 = por %p130, %p131
    %s134 = sadd.s32 %s133, 1
    %p137 = scmp.eq.s32.totalorder %s12, 1
    %p138 = scmp.ne.s32.totalorder %s133, %s135
    %p139 = scmp.eq.s32.totalorder %s12, 0
    %p140 = por %p138, %p139
    %p141 = scmp.ne.s32.totalorder %s133, %s135
    %p142 = scmp.eq.s32.totalorder %s17, 1
    %p143 = por %p141, %p142
    %p144 = scmp.ne.s32.totalorder %s135, %s136
    %p145 = scmp.eq.s32.totalorder %s17, 0
    %p146 = por %p144, %p145
    %p147 = scmp.ne.s32.totalorder %s135, %s136
    %p148 = scmp.eq.s32.totalorder %s18, 1
    %p149 = por %p147, %p148
    %p151 = scmp.ne.s32.totalorder %s136, %s150
    %p152 = scmp.eq.s32.totalorder %s18, 0
    %p153 = por %p151, %p152
    %s155 = sadd.s32 %s154, 1
    %p158 = scmp.eq.s32.totalorder %s12, 1
    %p159 = scmp.ne.s32.totalorder %s154, %s156
    %p160 = scmp.eq.s32.totalorder %s12, 0
    %p161 = por %p159, %p160
    %p162 = scmp.ne.s32.totalorder %s154, %s156
    %p163 = scmp.eq.s32.totalorder %s17, 1
    %p164 = por %p162, %p163
    %p165 = scmp.ne.s32.totalorder %s156, %s157
    %p166 = scmp.eq.s32.totalorder %s17, 0
    %p167 = por %p165, %p166
    %p168 = scmp.ne.s32.totalorder %s156, %s157
    %p169 = scmp.eq.s32.totalorder %s18, 1
    %p170 = por %p168, %p169
    %p172 = scmp.ne.s32.totalorder %s157, %s171
    %p173 = scmp.eq.s32.totalorder %s18, 0
    %p174 = por %p172, %p173
    %s175 = ssub.s32 %s19, %s31
    %p176 = scmp.eq.s32.totalorder %s175, 0
    %s178 = sadd.s32 %s177, 1
    %s179 = scalar_select %p176, %s177, %s178
    %p182 = pneg %p176
    %p183 = scmp.eq.s32.totalorder %s12, 1
    %p184 = por %p182, %p183
    %p185 = scmp.ne.s32.totalorder %s177, %s180
    %p186 = scmp.eq.s32.totalorder %s12, 0
    %p187 = por %p185, %p186
    %p188 = scmp.ne.s32.totalorder %s177, %s180
    %p189 = scmp.eq.s32.totalorder %s17, 1
    %p190 = por %p188, %p189
    %p191 = scmp.ne.s32.totalorder %s180, %s181
    %p192 = scmp.eq.s32.totalorder %s17, 0
    %p193 = por %p191, %p192
    %p194 = scmp.ne.s32.totalorder %s180, %s181
    %p195 = scmp.eq.s32.totalorder %s18, 1
    %p196 = por %p194, %p195
    %p198 = scmp.ne.s32.totalorder %s181, %s197
    %p199 = scmp.eq.s32.totalorder %s18, 0
    %p200 = por %p198, %p199
    %p201 = scmp.le.s32.totalorder 1, %s12
    %p202 = scmp.lt.s32.totalorder %s12, 3
    %p203 = pnand %p201, %p202
    %p204 = pneg %p203
    // Predicated region
    $region9: #{_forward_padded.3} parent=5 // pred_check
      _
    $region10: #{_forward_padded.3} parent=5 // pred_check_branch
      %206 = sbr.rel (%p203) target = $region12
    $region11: #{_forward_padded.3} parent=5 // pred_region
      %s207 = ssub.s32 %s12, 1
      // Predicated region
      $region13: #{_forward_padded.3} parent=11 // pred_check
        %p208 = pneg %p78
      $region14: #{_forward_padded.3} parent=11 // pred_check_branch
        %210 = sbr.rel (%p208) target = $region16
      $region15: #{_forward_padded.3} parent=11 // pred_region
        %s211 = smul.u32 16, %s22
        %p212 = scmp.lt.s32.totalorder %s211, 15
        %s213 = scalar_select %p212, %s211, 15
        %s214 = smul.addr %s213, 4
        %s215 = scalar_lea.vmem %s1, %s214
        %s216 = smul.u32 16, %s22
      $region16: #{_forward_padded.3} parent=11 // pred_fallthru
        _
      // Predicated region
      $region17: #{_forward_padded.3} parent=11 // pred_check
        %p217 = pneg %p125
      $region18: #{_forward_padded.3} parent=11 // pred_check_branch
        %219 = sbr.rel (%p217) target = $region20
      $region19: #{_forward_padded.3} parent=11 // pred_region
        _
      $region20: #{_forward_padded.3} parent=11 // pred_fallthru
        _
      // Predicated region
      $region21: #{_forward_padded.3} parent=11 // pred_check
        %p220 = pneg %p146
      $region22: #{_forward_padded.3} parent=11 // pred_check_branch
        %222 = sbr.rel (%p220) target = $region24
      $region23: #{_forward_padded.3} parent=11 // pred_region
        _
      $region24: #{_forward_padded.3} parent=11 // pred_fallthru
        _
      // Predicated region
      $region25: #{_forward_padded.3} parent=11 // pred_check
        %p223 = pneg %p167
      $region26: #{_forward_padded.3} parent=11 // pred_check_branch
        %225 = sbr.rel (%p223) target = $region28
      $region27: #{_forward_padded.3} parent=11 // pred_region
        _
      $region28: #{_forward_padded.3} parent=11 // pred_fallthru
        _
    $region12: #{_forward_padded.3} parent=5 // pred_fallthru
      _
    %p226 = scmp.lt.s32.totalorder %s12, 2
    // Predicated region
    $region29: #{_forward_padded.3} parent=5 // pred_check
      %p227 = pneg %p226
    $region30: #{_forward_padded.3} parent=5 // pred_check_branch
      %229 = sbr.rel (%p227) target = $region32
    $region31: #{_forward_padded.3} parent=5 // pred_region
      // Predicated region
      $region33: #{_forward_padded.3} parent=31 // pred_check
        %p230 = pneg %p46
      $region34: #{_forward_padded.3} parent=31 // pred_check_branch
        %232 = sbr.rel (%p230) target = $region36
      $region35: #{_forward_padded.3} parent=31 // pred_region
        %s233 = smul.u32 2, %s19
        %p234 = scmp.lt.s32.totalorder %s233, 3
        %s235 = scalar_select %p234, %s233, 3
        %p236 = scmp.lt.s32.totalorder %s20, 0
        %s237 = scalar_select %p236, %s20, 0
        %s238 = sadd.s32 %s237, %s235
        %s239 = smul.addr %s238, 4
        %s240 = scalar_lea.vmem %s0, %s239
        %s241 = smul.u32 2, %s19
      $region36: #{_forward_padded.3} parent=31 // pred_fallthru
        _
      // Predicated region
      $region37: #{_forward_padded.3} parent=31 // pred_check
        %p242 = pneg %p98
      $region38: #{_forward_padded.3} parent=31 // pred_check_branch
        %244 = sbr.rel (%p242) target = $region40
      $region39: #{_forward_padded.3} parent=31 // pred_region
        %s245 = smul.u32 2, %s19
        %p246 = scmp.lt.s32.totalorder %s245, 15
        %s247 = scalar_select %p246, %s245, 15
        %s248 = smul.addr %s247, 4
        %s249 = scalar_lea.vmem %s2, %s248
        %s250 = smul.u32 2, %s19
      $region40: #{_forward_padded.3} parent=31 // pred_fallthru
        _
    $region32: #{_forward_padded.3} parent=5 // pred_fallthru
      _
    %p251 = scmp.le.s32.totalorder 1, %s12
    %p252 = scmp.lt.s32.totalorder %s12, 3
    %p253 = pnand %p251, %p252
    %p254 = pneg %p253
    // Predicated region
    $region41: #{_forward_padded.3} parent=5 // pred_check
      _
    $region42: #{_forward_padded.3} parent=5 // pred_check_branch
      %256 = sbr.rel (%p253) target = $region44
    $region43: #{_forward_padded.3} parent=5 // pred_region
      %s257 = ssub.s32 %s12, 1
      %s258 = smul.u32 2, %s21
      %p259 = scmp.lt.s32.totalorder %s258, 3
      %s260 = scalar_select %p259, %s258, 3
      %p261 = scmp.lt.s32.totalorder %s22, 0
      %s262 = scalar_select %p261, %s22, 0
      %s263 = sadd.s32 %s262, %s260
      %s264 = smul.addr %s263, 4
      %s265 = scalar_lea.vmem %s0, %s264
      %p266 = pneg %p52
      %p267 = pneg %p49
      %s268 = smul.u32 16, %s22
      %p269 = scmp.lt.s32.totalorder %s268, 15
      %s270 = scalar_select %p269, %s268, 15
      %s271 = smul.addr %s270, 4
      %s272 = scalar_lea.vmem %s1, %s271
      %p273 = pneg %p78
      %p274 = pneg %p75
      %s275 = smul.u32 2, %s21
      %p276 = scmp.lt.s32.totalorder %s275, 15
      %s277 = scalar_select %p276, %s275, 15
      %s278 = smul.addr %s277, 4
      %s279 = scalar_lea.vmem %s2, %s278
      %p280 = pneg %p104
      %p281 = pneg %p101
      %p282 = pneg %p125
      %p283 = pneg %p122
      %p284 = pneg %p146
      %p285 = pneg %p143
      %p286 = pneg %p167
      %p287 = pneg %p164
      %p288 = pneg %p193
      %p289 = pneg %p190
      %s290 = smul.u32 2, %s21
      %p291 = scmp.lt.s32.totalorder %s290, 3
      %s292 = scalar_select %p291, %s290, 3
      %s293 = smul.addr %s292, 4
      %s294 = scalar_lea.vmem %s6, %s293
      %s295 = smul.u32 2, %s21
      %p296 = scmp.lt.s32.totalorder %s295, 3
      %s297 = scalar_select %p296, %s295, 3
      %p298 = scmp.lt.s32.totalorder %s22, 0
      %s299 = scalar_select %p298, %s22, 0
      %s300 = sadd.s32 %s299, %s297
      %s301 = smul.addr %s300, 4
      %s302 = scalar_lea.vmem %s0, %s301
      %s303 = smul.u32 2, %s21
      %s304 = smul.u32 16, %s22
      %p305 = scmp.lt.s32.totalorder %s304, 15
      %s306 = scalar_select %p305, %s304, 15
      %s307 = smul.addr %s306, 4
      %s308 = scalar_lea.vmem %s1, %s307
      %s309 = smul.u32 16, %s22
      %s310 = smul.u32 2, %s21
      %p311 = scmp.lt.s32.totalorder %s310, 15
      %s312 = scalar_select %p311, %s310, 15
      %s313 = smul.addr %s312, 4
      %s314 = scalar_lea.vmem %s2, %s313
      %s315 = smul.u32 2, %s21
      %s316 = smul.u32 2, %s21
      %p317 = scmp.lt.s32.totalorder %s316, 3
      %s318 = scalar_select %p317, %s316, 3
      %s319 = smul.addr %s318, 4
      %s320 = scalar_lea.vmem %s6, %s319
      %s321 = smul.u32 2, %s21
      %p323 = scmp.eq.s32.totalorder %s22, 0
      // Predicated region
      $region45: #{_forward_padded.3} parent=43 // pred_check
        %p324 = pneg %p323
      $region46: #{_forward_padded.3} parent=43 // pred_check_branch
        %326 = sbr.rel (%p324) target = $region48
      $region47: #{_forward_padded.3} parent=43 // pred_region
        %327 = vst [vmem:[#allocation2] sm:$0xff] 0.0
        %328 = vst [vmem:[#allocation2 + $0x8] sm:$0xff] 0.0
      $region48: #{_forward_padded.3} parent=43 // pred_fallthru
        _
      %v329 = vld [vmem:[#allocation2] sm:$0xff]
      %v330 = vld [vmem:[#allocation2 + $0x8] sm:$0xff]
      %v331 = vld [vmem:[%s302] sm:$0xf]
      %v332 = vld [vmem:[%s302 + $0x4] sm:$0xf]
      %v333 = vld [vmem:[%s308] sm:$0xf]
      %v334 = vld [vmem:[%s308 + $0x4] sm:$0xf]
      %v335 = vld [vmem:[%s308 + $0x8] sm:$0xf]
      %v336 = vld [vmem:[%s308 + $0xc] sm:$0xf]
      %v337 = vld [vmem:[%s308 + $0x10] sm:$0xf]
      %v338 = vld [vmem:[%s308 + $0x14] sm:$0xf]
      %v339 = vld [vmem:[%s308 + $0x18] sm:$0xf]
      %v340 = vld [vmem:[%s308 + $0x1c] sm:$0xf]
      %v341 = vld [vmem:[%s308 + $0x20] sm:$0xf]
      %v342 = vld [vmem:[%s308 + $0x24] sm:$0xf]
      %v343 = vld [vmem:[%s308 + $0x28] sm:$0xf]
      %v344 = vld [vmem:[%s308 + $0x2c] sm:$0xf]
      %v345 = vld [vmem:[%s308 + $0x30] sm:$0xf]
      %v346 = vld [vmem:[%s308 + $0x34] sm:$0xf]
      %v347 = vld [vmem:[%s308 + $0x38] sm:$0xf]
      %v348 = vld [vmem:[%s308 + $0x3c] sm:$0xf]
      %v351 = vunpack.c.l.b16 %v331
      %v352 = vunpack.c.l.b16 %v332
      %v353 = vpack.c.b16 %v352, %v351
      %v371 = vunpack.c.l.b16 %v333
      %v372 = vunpack.c.l.b16 %v334
      %v373 = vunpack.c.l.b16 %v335
      %v374 = vunpack.c.l.b16 %v336
      %v375 = vunpack.c.l.b16 %v337
      %v376 = vunpack.c.l.b16 %v338
      %v377 = vunpack.c.l.b16 %v339
      %v378 = vunpack.c.l.b16 %v340
      %v379 = vunpack.c.l.b16 %v341
      %v380 = vunpack.c.l.b16 %v342
      %v381 = vunpack.c.l.b16 %v343
      %v382 = vunpack.c.l.b16 %v344
      %v383 = vunpack.c.l.b16 %v345
      %v384 = vunpack.c.l.b16 %v346
      %v385 = vunpack.c.l.b16 %v347
      %v386 = vunpack.c.l.b16 %v348
      %v387 = vpack.c.b16 %v372, %v371
      %v388 = vpack.c.b16 %v374, %v373
      %v389 = vpack.c.b16 %v376, %v375
      %v390 = vpack.c.b16 %v378, %v377
      %v391 = vpack.c.b16 %v380, %v379
      %v392 = vpack.c.b16 %v382, %v381
      %v393 = vpack.c.b16 %v384, %v383
      %v394 = vpack.c.b16 %v386, %v385
      %403 = vmatprep.subr.bf16.mxu0 0
      %404 = vmatpush1.bf16.msra.mxu0 %v387
      %405 = vmatprep.subr.bf16.mxu0 0
      %406 = vmatpush1.bf16.msra.mxu0 %v388
      %407 = vmatprep.subr.bf16.mxu0 0
      %408 = vmatpush1.bf16.msra.mxu0 %v389
      %409 = vmatprep.subr.bf16.mxu0 0
      %410 = vmatpush1.bf16.msra.mxu0 %v390
      %411 = vmatprep.subr.bf16.mxu0 0
      %412 = vmatpush1.bf16.msra.mxu0 %v391
      %413 = vmatprep.subr.bf16.mxu0 0
      %414 = vmatpush1.bf16.msra.mxu0 %v392
      %415 = vmatprep.subr.bf16.mxu0 0
      %416 = vmatpush1.bf16.msra.mxu0 %v393
      %417 = vmatprep.subr.bf16.mxu0 0
      %418 = vmatpush1.bf16.msra.mxu0 %v394
      %419 = vmatprep.subr.bf16.mxu0 0
      %420 = vmatpush1.bf16.msra.mxu0 0
      %421 = vmatprep.subr.bf16.mxu0 0
      %422 = vmatpush1.bf16.msra.mxu0 0
      %423 = vmatprep.subr.bf16.mxu0 0
      %424 = vmatpush1.bf16.msra.mxu0 0
      %425 = vmatprep.subr.bf16.mxu0 0
      %426 = vmatpush1.bf16.msra.mxu0 0
      %427 = vmatprep.subr.bf16.mxu0 0
      %428 = vmatpush1.bf16.msra.mxu0 0
      %429 = vmatprep.subr.bf16.mxu0 0
      %430 = vmatpush1.bf16.msra.mxu0 0
      %431 = vmatprep.subr.bf16.mxu0 0
      %432 = vmatpush1.bf16.msra.mxu0 0
      %433 = vmatprep.subr.bf16.mxu0 0
      %434 = vmatpush1.bf16.msra.mxu0 0
      %435 = vmatprep.mubr.bf16.mxu0 0
      %436 = vmatmul.mubr.bf16.gmra.mrb[0].mxu0 %v353
      %v437 = vpop.f32.mrb[0].mxu0
      %v438 = vadd.f32 0.0, %v437
      %v439 = vpop.f32.mrb[0].mxu0
      %v440 = vpop.f32.mrb[0].mxu0
      %v441 = vadd.f32 0.0, %v440
      %v442 = vpop.f32.mrb[0].mxu0
      %443 = vdwg.mxu0
      %v444 = vadd.f32 %v329, %v438
      %v445 = vadd.f32 %v330, %v441
      %446 = vst [vmem:[#allocation2] sm:$0xff] %v444
      %447 = vst [vmem:[#allocation2 + $0x8] sm:$0xff] %v445
      // Predicated region
      $region49: #{_forward_padded.3} parent=43 // pred_check
        %p448 = pneg %p323
      $region50: #{_forward_padded.3} parent=43 // pred_check_branch
        %450 = sbr.rel (%p448) target = $region52
      $region51: #{_forward_padded.3} parent=43 // pred_region
        %v451 = vld [vmem:[#allocation2] sm:$0xff]
        %v452 = vld [vmem:[#allocation2 + $0x8] sm:$0xff]
        %v453 = vpack.c.bf16 %v452, %v451
        %v454 = vld [vmem:[%s314] sm:$0xf]
        %v455 = vld [vmem:[%s314 + $0x4] sm:$0xf]
        %v456 = vld [vmem:[%s3] sm:$0xf]
        %v457 = vld [vmem:[%s3 + $0x4] sm:$0xf]
        %v458 = vld [vmem:[%s3 + $0x8] sm:$0xf]
        %v459 = vld [vmem:[%s3 + $0xc] sm:$0xf]
        %v460 = vld [vmem:[%s3 + $0x10] sm:$0xf]
        %v461 = vld [vmem:[%s3 + $0x14] sm:$0xf]
        %v462 = vld [vmem:[%s3 + $0x18] sm:$0xf]
        %v463 = vld [vmem:[%s3 + $0x1c] sm:$0xf]
        %v464 = vld [vmem:[%s3 + $0x20] sm:$0xf]
        %v465 = vld [vmem:[%s3 + $0x24] sm:$0xf]
        %v466 = vld [vmem:[%s3 + $0x28] sm:$0xf]
        %v467 = vld [vmem:[%s3 + $0x2c] sm:$0xf]
        %v468 = vld [vmem:[%s3 + $0x30] sm:$0xf]
        %v469 = vld [vmem:[%s3 + $0x34] sm:$0xf]
        %v470 = vld [vmem:[%s3 + $0x38] sm:$0xf]
        %v471 = vld [vmem:[%s3 + $0x3c] sm:$0xf]
        %v472 = vld [vmem:[%s4] sm:$0xf]
        %v473 = vld [vmem:[%s4 + $0x4] sm:$0xf]
        %v474 = vld [vmem:[%s4 + $0x8] sm:$0xf]
        %v475 = vld [vmem:[%s4 + $0xc] sm:$0xf]
        %v476 = vld [vmem:[%s4 + $0x10] sm:$0xf]
        %v477 = vld [vmem:[%s4 + $0x14] sm:$0xf]
        %v478 = vld [vmem:[%s4 + $0x18] sm:$0xf]
        %v479 = vld [vmem:[%s4 + $0x1c] sm:$0xf]
        %v480 = vld [vmem:[%s4 + $0x20] sm:$0xf]
        %v481 = vld [vmem:[%s4 + $0x24] sm:$0xf]
        %v482 = vld [vmem:[%s4 + $0x28] sm:$0xf]
        %v483 = vld [vmem:[%s4 + $0x2c] sm:$0xf]
        %v484 = vld [vmem:[%s4 + $0x30] sm:$0xf]
        %v485 = vld [vmem:[%s4 + $0x34] sm:$0xf]
        %v486 = vld [vmem:[%s4 + $0x38] sm:$0xf]
        %v487 = vld [vmem:[%s4 + $0x3c] sm:$0xf]
        %v504 = vunpack.c.l.b16 %v472
        %v505 = vunpack.c.l.b16 %v473
        %v506 = vunpack.c.l.b16 %v474
        %v507 = vunpack.c.l.b16 %v475
        %v508 = vunpack.c.l.b16 %v476
        %v509 = vunpack.c.l.b16 %v477
        %v510 = vunpack.c.l.b16 %v478
        %v511 = vunpack.c.l.b16 %v479
        %v512 = vunpack.c.l.b16 %v480
        %v513 = vunpack.c.l.b16 %v481
        %v514 = vunpack.c.l.b16 %v482
        %v515 = vunpack.c.l.b16 %v483
        %v516 = vunpack.c.l.b16 %v484
        %v517 = vunpack.c.l.b16 %v485
        %v518 = vunpack.c.l.b16 %v486
        %v519 = vunpack.c.l.b16 %v487
        %v520 = vpack.c.b16 %v505, %v504
        %v521 = vpack.c.b16 %v507, %v506
        %v522 = vpack.c.b16 %v509, %v508
        %v523 = vpack.c.b16 %v511, %v510
        %v524 = vpack.c.b16 %v513, %v512
        %v525 = vpack.c.b16 %v515, %v514
        %v526 = vpack.c.b16 %v517, %v516
        %v527 = vpack.c.b16 %v519, %v518
        %536 = vmatprep.subr.bf16.mxu0 0
        %537 = vmatpush1.bf16.msra.mxu0 %v520
        %538 = vmatprep.subr.bf16.mxu0 0
        %539 = vmatpush1.bf16.msra.mxu0 %v521
        %540 = vmatprep.subr.bf16.mxu0 0
        %541 = vmatpush1.bf16.msra.mxu0 %v522
        %542 = vmatprep.subr.bf16.mxu0 0
        %543 = vmatpush1.bf16.msra.mxu0 %v523
        %544 = vmatprep.subr.bf16.mxu0 0
        %545 = vmatpush1.bf16.msra.mxu0 %v524
        %546 = vmatprep.subr.bf16.mxu0 0
        %547 = vmatpush1.bf16.msra.mxu0 %v525
        %548 = vmatprep.subr.bf16.mxu0 0
        %549 = vmatpush1.bf16.msra.mxu0 %v526
        %550 = vmatprep.subr.bf16.mxu0 0
        %551 = vmatpush1.bf16.msra.mxu0 %v527
        %552 = vmatprep.subr.bf16.mxu0 0
        %553 = vmatpush1.bf16.msra.mxu0 0
        %554 = vmatprep.subr.bf16.mxu0 0
        %555 = vmatpush1.bf16.msra.mxu0 0
        %556 = vmatprep.subr.bf16.mxu0 0
        %557 = vmatpush1.bf16.msra.mxu0 0
        %558 = vmatprep.subr.bf16.mxu0 0
        %559 = vmatpush1.bf16.msra.mxu0 0
        %560 = vmatprep.subr.bf16.mxu0 0
        %561 = vmatpush1.bf16.msra.mxu0 0
        %562 = vmatprep.subr.bf16.mxu0 0
        %563 = vmatpush1.bf16.msra.mxu0 0
        %564 = vmatprep.subr.bf16.mxu0 0
        %565 = vmatpush1.bf16.msra.mxu0 0
        %566 = vmatprep.subr.bf16.mxu0 0
        %567 = vmatpush1.bf16.msra.mxu0 0
        %568 = vmatprep.mubr.bf16.mxu0 0
        %569 = vmatmul.mubr.bf16.gmra.mrb[0].mxu0 %v453
        %v570 = vpop.f32.mrb[0].mxu0
        %v571 = vadd.f32 0.0, %v570
        %v572 = vpop.f32.mrb[0].mxu0
        %v573 = vpop.f32.mrb[0].mxu0
        %v574 = vadd.f32 0.0, %v573
        %v575 = vpop.f32.mrb[0].mxu0
        %576 = vdwg.mxu0
        %v579 = vunpack.c.l.b16 %v454
        %v580 = vunpack.c.l.b16 %v455
        %v581 = vpack.c.b16 %v580, %v579
        %v599 = vunpack.c.l.b16 %v456
        %v600 = vunpack.c.l.b16 %v457
        %v601 = vunpack.c.l.b16 %v458
        %v602 = vunpack.c.l.b16 %v459
        %v603 = vunpack.c.l.b16 %v460
        %v604 = vunpack.c.l.b16 %v461
        %v605 = vunpack.c.l.b16 %v462
        %v606 = vunpack.c.l.b16 %v463
        %v607 = vunpack.c.l.b16 %v464
        %v608 = vunpack.c.l.b16 %v465
        %v609 = vunpack.c.l.b16 %v466
        %v610 = vunpack.c.l.b16 %v467
        %v611 = vunpack.c.l.b16 %v468
        %v612 = vunpack.c.l.b16 %v469
        %v613 = vunpack.c.l.b16 %v470
        %v614 = vunpack.c.l.b16 %v471
        %v615 = vpack.c.b16 %v600, %v599
        %v616 = vpack.c.b16 %v602, %v601
        %v617 = vpack.c.b16 %v604, %v603
        %v618 = vpack.c.b16 %v606, %v605
        %v619 = vpack.c.b16 %v608, %v607
        %v620 = vpack.c.b16 %v610, %v609
        %v621 = vpack.c.b16 %v612, %v611
        %v622 = vpack.c.b16 %v614, %v613
        %631 = vmatprep.subr.bf16.mxu0 0
        %632 = vmatpush1.bf16.msra.mxu0 %v615
        %633 = vmatprep.subr.bf16.mxu0 0
        %634 = vmatpush1.bf16.msra.mxu0 %v616
        %635 = vmatprep.subr.bf16.mxu0 0
        %636 = vmatpush1.bf16.msra.mxu0 %v617
        %637 = vmatprep.subr.bf16.mxu0 0
        %638 = vmatpush1.bf16.msra.mxu0 %v618
        %639 = vmatprep.subr.bf16.mxu0 0
        %640 = vmatpush1.bf16.msra.mxu0 %v619
        %641 = vmatprep.subr.bf16.mxu0 0
        %642 = vmatpush1.bf16.msra.mxu0 %v620
        %643 = vmatprep.subr.bf16.mxu0 0
        %644 = vmatpush1.bf16.msra.mxu0 %v621
        %645 = vmatprep.subr.bf16.mxu0 0
        %646 = vmatpush1.bf16.msra.mxu0 %v622
        %647 = vmatprep.subr.bf16.mxu0 0
        %648 = vmatpush1.bf16.msra.mxu0 0
        %649 = vmatprep.subr.bf16.mxu0 0
        %650 = vmatpush1.bf16.msra.mxu0 0
        %651 = vmatprep.subr.bf16.mxu0 0
        %652 = vmatpush1.bf16.msra.mxu0 0
        %653 = vmatprep.subr.bf16.mxu0 0
        %654 = vmatpush1.bf16.msra.mxu0 0
        %655 = vmatprep.subr.bf16.mxu0 0
        %656 = vmatpush1.bf16.msra.mxu0 0
        %657 = vmatprep.subr.bf16.mxu0 0
        %658 = vmatpush1.bf16.msra.mxu0 0
        %659 = vmatprep.subr.bf16.mxu0 0
        %660 = vmatpush1.bf16.msra.mxu0 0
        %661 = vmatprep.subr.bf16.mxu0 0
        %662 = vmatpush1.bf16.msra.mxu0 0
        %663 = vmatprep.mubr.bf16.mxu0 0
        %664 = vmatmul.mubr.bf16.gmra.mrb[0].mxu0 %v581
        %v665 = vpop.f32.mrb[0].mxu0
        %v666 = vadd.f32 %v571, %v665
        %v667 = vpop.f32.mrb[0].mxu0
        %v668 = vpop.f32.mrb[0].mxu0
        %v669 = vadd.f32 %v574, %v668
        %v670 = vpop.f32.mrb[0].mxu0
        %671 = vdwg.mxu0
        %v672 = vld [vmem:[%s5] sm:$0x1]
        %v674 = vlaneseq
        %v675 = vshrl.u32 %v674, 7
        %v676 = vsub.s32 0, %v675
        %v677 = vrot.slane %v672, %v676
        %v679 = vadd.f32 %v666, %v677
        %v680 = vadd.f32 %v669, %v677
        %v681 = vmax.f32 %v679, 0.0
        %v682 = vmax.f32 %v680, 0.0
        %v683 = vpack.c.bf16 %v682, %v681
        %v685 = vunpack.c.l.b16 %v683
        %v686 = vunpack.c.h.b16 %v683
        %v687 = vpack.c.b16 %v685, %v685
        %v688 = vpack.c.b16 %v686, %v686
        %691 = vst [vmem:[%s320] sm:$0xf] %v687
        %692 = vst [vmem:[%s320 + $0x4] sm:$0xf] %v688
      $region52: #{_forward_padded.3} parent=43 // pred_fallthru
        _
      %s693 = smul.u32 2, %s21
      %p694 = scmp.lt.s32.totalorder %s693, 3
      %s695 = scalar_select %p694, %s693, 3
      %s696 = smul.addr %s695, 4
      %s697 = scalar_lea.vmem %s6, %s696
      // Predicated region
      $region53: #{_forward_padded.3} parent=43 // pred_check
        %p698 = pneg %p190
      $region54: #{_forward_padded.3} parent=43 // pred_check_branch
        %700 = sbr.rel (%p698) target = $region56
      $region55: #{_forward_padded.3} parent=43 // pred_region
        %s701 = smul.u32 2, %s21
      $region56: #{_forward_padded.3} parent=43 // pred_fallthru
        _
    $region44: #{_forward_padded.3} parent=5 // pred_fallthru
      _
    %p702 = scmp.le.s32.totalorder 2, %s12
    // Predicated region
    $region57: #{_forward_padded.3} parent=5 // pred_check
      %p703 = pneg %p702
    $region58: #{_forward_padded.3} parent=5 // pred_check_branch
      %705 = sbr.rel (%p703) target = $region60
    $region59: #{_forward_padded.3} parent=5 // pred_region
      %s706 = ssub.s32 %s12, 2
      // Predicated region
      $region61: #{_forward_padded.3} parent=59 // pred_check
        %p707 = pneg %p196
      $region62: #{_forward_padded.3} parent=59 // pred_check_branch
        %709 = sbr.rel (%p707) target = $region64
      $region63: #{_forward_padded.3} parent=59 // pred_region
        %s710 = smul.u32 2, %s23
        %p711 = scmp.lt.s32.totalorder %s710, 3
        %s712 = scalar_select %p711, %s710, 3
        %s713 = smul.addr %s712, 4
        %s714 = scalar_lea.vmem %s6, %s713
      $region64: #{_forward_padded.3} parent=59 // pred_fallthru
        _
    $region60: #{_forward_padded.3} parent=5 // pred_fallthru
      _
  $region6: #{_forward_padded.3} parent=0 // loop_footer
    %s16 = sadd.s32 1, %s12
  $region7: #{_forward_padded.3} parent=0 // loop_footer_branch
    %11 = sbr.rel target = $region3
  $region8: #{_forward_padded.3} parent=0 // loop_exit
    _

// kernel: _forward_padded.5
$region0: #{_forward_padded.5}
  #allocation0 [shape = 'u32[]', space=smem, size = 0x4, offset = 0x4, fixed_abs, tag = 'smem constant byte address 0x4 - core index']
  #allocation1 [shape = 'u32[144,128]{1,0:T(1,128)}', space=vmem, size = 0x12000, scoped, tag = 'internal scratch']
  #allocation2 [shape = 'f32[16,128]{1,0:T(8,128)}', space=vmem, size = 0x2000, scoped, tag = 'scratch operand']
  %s0 = inlined_call_operand.vmem [shape: bf16[16,128], index: 0, kind: input, shape index: {}]
  %s1 = inlined_call_operand.vmem [shape: bf16[128,128], index: 1, kind: input, shape index: {}, may-alias: {1,2}]
  %s2 = inlined_call_operand.vmem [shape: bf16[128,128], index: 2, kind: input, shape index: {}, may-alias: {1,2}]
  %s3 = inlined_call_operand.vmem [shape: bf16[128,128], index: 3, kind: input, shape index: {}]
  %s4 = inlined_call_operand.vmem [shape: bf16[128,128], index: 4, kind: input, shape index: {}]
  %s5 = inlined_call_operand.vmem [shape: f32[1,128], index: 5, kind: input, shape index: {}]
  %s6 = inlined_call_operand.vmem [shape: bf16[16,128], index: 6, kind: output, shape index: {}]
  %s7 = sld [smem:[#allocation0]]
  $region42: #{_forward_padded.5} parent=0
    _
  %s9 = ssub.s32 1, %s7
  %s10 = scalar_select 0, %s9, %s7
  // Predicated region
  $region2: #{_forward_padded.5} parent=0 // pred_check
    _
  $region3: #{_forward_padded.5} parent=0 // pred_check_branch
    %12 = sbr.rel (0) target = $region5
  $region4: #{_forward_padded.5} parent=0 // pred_region
    _
  $region5: #{_forward_padded.5} parent=0 // pred_fallthru
    _
  // Predicated region
  $region6: #{_forward_padded.5} parent=0 // pred_check
    _
  $region7: #{_forward_padded.5} parent=0 // pred_check_branch
    %14 = sbr.rel (0) target = $region9
  $region8: #{_forward_padded.5} parent=0 // pred_region
    _
  $region9: #{_forward_padded.5} parent=0 // pred_fallthru
    _
  // Predicated region
  $region10: #{_forward_padded.5} parent=0 // pred_check
    _
  $region11: #{_forward_padded.5} parent=0 // pred_check_branch
    %16 = sbr.rel (0) target = $region13
  $region12: #{_forward_padded.5} parent=0 // pred_region
    _
  $region13: #{_forward_padded.5} parent=0 // pred_fallthru
    _
  // Predicated region
  $region14: #{_forward_padded.5} parent=0 // pred_check
    _
  $region15: #{_forward_padded.5} parent=0 // pred_check_branch
    %18 = sbr.rel (0) target = $region17
  $region16: #{_forward_padded.5} parent=0 // pred_region
    _
  $region17: #{_forward_padded.5} parent=0 // pred_fallthru
    _
  // Predicated region
  $region18: #{_forward_padded.5} parent=0 // pred_check
    _
  $region19: #{_forward_padded.5} parent=0 // pred_check_branch
    %20 = sbr.rel (0) target = $region21
  $region20: #{_forward_padded.5} parent=0 // pred_region
    _
  $region21: #{_forward_padded.5} parent=0 // pred_fallthru
    _
  // Predicated region
  $region22: #{_forward_padded.5} parent=0 // pred_check
    _
  $region23: #{_forward_padded.5} parent=0 // pred_check_branch
    %22 = sbr.rel (0) target = $region25
  $region24: #{_forward_padded.5} parent=0 // pred_region
    _
  $region25: #{_forward_padded.5} parent=0 // pred_fallthru
    _
  %p24 = scmp.eq.s32.totalorder 0, 0
  // Predicated region
  $region26: #{_forward_padded.5} parent=0 // pred_check
    %p25 = pneg %p24
  $region27: #{_forward_padded.5} parent=0 // pred_check_branch
    %27 = sbr.rel (%p25) target = $region29
  $region28: #{_forward_padded.5} parent=0 // pred_region
    %28 = vst [vmem:[#allocation2] sm:$0xff] 0.0
    %29 = vst [vmem:[#allocation2 + $0x8] sm:$0xff] 0.0
  $region29: #{_forward_padded.5} parent=0 // pred_fallthru
    _
  %v30 = vld [vmem:[#allocation2] sm:$0xff]
  %v31 = vld [vmem:[#allocation2 + $0x8] sm:$0xff]
  %v32 = vld [vmem:[%s0] sm:$0xf]
  %v33 = vld [vmem:[%s0 + $0x4] sm:$0xf]
  %v34 = vld [vmem:[%s1] sm:$0xf]
  %v35 = vld [vmem:[%s1 + $0x4] sm:$0xf]
  %v36 = vld [vmem:[%s1 + $0x8] sm:$0xf]
  %v37 = vld [vmem:[%s1 + $0xc] sm:$0xf]
  %v38 = vld [vmem:[%s1 + $0x10] sm:$0xf]
  %v39 = vld [vmem:[%s1 + $0x14] sm:$0xf]
  %v40 = vld [vmem:[%s1 + $0x18] sm:$0xf]
  %v41 = vld [vmem:[%s1 + $0x1c] sm:$0xf]
  %v42 = vld [vmem:[%s1 + $0x20] sm:$0xf]
  %v43 = vld [vmem:[%s1 + $0x24] sm:$0xf]
  %v44 = vld [vmem:[%s1 + $0x28] sm:$0xf]
  %v45 = vld [vmem:[%s1 + $0x2c] sm:$0xf]
  %v46 = vld [vmem:[%s1 + $0x30] sm:$0xf]
  %v47 = vld [vmem:[%s1 + $0x34] sm:$0xf]
  %v48 = vld [vmem:[%s1 + $0x38] sm:$0xf]
  %v49 = vld [vmem:[%s1 + $0x3c] sm:$0xf]
  %v52 = vunpack.c.l.b16 %v32
  %v53 = vunpack.c.l.b16 %v33
  %v54 = vpack.c.b16 %v53, %v52
  %v72 = vunpack.c.l.b16 %v34
  %v73 = vunpack.c.l.b16 %v35
  %v74 = vunpack.c.l.b16 %v36
  %v75 = vunpack.c.l.b16 %v37
  %v76 = vunpack.c.l.b16 %v38
  %v77 = vunpack.c.l.b16 %v39
  %v78 = vunpack.c.l.b16 %v40
  %v79 = vunpack.c.l.b16 %v41
  %v80 = vunpack.c.l.b16 %v42
  %v81 = vunpack.c.l.b16 %v43
  %v82 = vunpack.c.l.b16 %v44
  %v83 = vunpack.c.l.b16 %v45
  %v84 = vunpack.c.l.b16 %v46
  %v85 = vunpack.c.l.b16 %v47
  %v86 = vunpack.c.l.b16 %v48
  %v87 = vunpack.c.l.b16 %v49
  %v88 = vpack.c.b16 %v73, %v72
  %v89 = vpack.c.b16 %v75, %v74
  %v90 = vpack.c.b16 %v77, %v76
  %v91 = vpack.c.b16 %v79, %v78
  %v92 = vpack.c.b16 %v81, %v80
  %v93 = vpack.c.b16 %v83, %v82
  %v94 = vpack.c.b16 %v85, %v84
  %v95 = vpack.c.b16 %v87, %v86
  %104 = vmatprep.subr.bf16.mxu0 0
  %105 = vmatpush1.bf16.msra.mxu0 %v88
  %106 = vmatprep.subr.bf16.mxu0 0
  %107 = vmatpush1.bf16.msra.mxu0 %v89
  %108 = vmatprep.subr.bf16.mxu0 0
  %109 = vmatpush1.bf16.msra.mxu0 %v90
  %110 = vmatprep.subr.bf16.mxu0 0
  %111 = vmatpush1.bf16.msra.mxu0 %v91
  %112 = vmatprep.subr.bf16.mxu0 0
  %113 = vmatpush1.bf16.msra.mxu0 %v92
  %114 = vmatprep.subr.bf16.mxu0 0
  %115 = vmatpush1.bf16.msra.mxu0 %v93
  %116 = vmatprep.subr.bf16.mxu0 0
  %117 = vmatpush1.bf16.msra.mxu0 %v94
  %118 = vmatprep.subr.bf16.mxu0 0
  %119 = vmatpush1.bf16.msra.mxu0 %v95
  %120 = vmatprep.subr.bf16.mxu0 0
  %121 = vmatpush1.bf16.msra.mxu0 0
  %122 = vmatprep.subr.bf16.mxu0 0
  %123 = vmatpush1.bf16.msra.mxu0 0
  %124 = vmatprep.subr.bf16.mxu0 0
  %125 = vmatpush1.bf16.msra.mxu0 0
  %126 = vmatprep.subr.bf16.mxu0 0
  %127 = vmatpush1.bf16.msra.mxu0 0
  %128 = vmatprep.subr.bf16.mxu0 0
  %129 = vmatpush1.bf16.msra.mxu0 0
  %130 = vmatprep.subr.bf16.mxu0 0
  %131 = vmatpush1.bf16.msra.mxu0 0
  %132 = vmatprep.subr.bf16.mxu0 0
  %133 = vmatpush1.bf16.msra.mxu0 0
  %134 = vmatprep.subr.bf16.mxu0 0
  %135 = vmatpush1.bf16.msra.mxu0 0
  %136 = vmatprep.mubr.bf16.mxu0 0
  %137 = vmatmul.mubr.bf16.gmra.mrb[0].mxu0 %v54
  %v138 = vpop.f32.mrb[0].mxu0
  %v139 = vadd.f32 0.0, %v138
  %v140 = vpop.f32.mrb[0].mxu0
  %v141 = vpop.f32.mrb[0].mxu0
  %v142 = vadd.f32 0.0, %v141
  %v143 = vpop.f32.mrb[0].mxu0
  %144 = vdwg.mxu0
  %v145 = vadd.f32 %v30, %v139
  %v146 = vadd.f32 %v31, %v142
  %147 = vst [vmem:[#allocation2] sm:$0xff] %v145
  %148 = vst [vmem:[#allocation2 + $0x8] sm:$0xff] %v146
  // Predicated region
  $region30: #{_forward_padded.5} parent=0 // pred_check
    %p149 = pneg %p24
  $region31: #{_forward_padded.5} parent=0 // pred_check_branch
    %151 = sbr.rel (%p149) target = $region33
  $region32: #{_forward_padded.5} parent=0 // pred_region
    %v152 = vld [vmem:[#allocation2] sm:$0xff]
    %v153 = vld [vmem:[#allocation2 + $0x8] sm:$0xff]
    %v154 = vpack.c.bf16 %v153, %v152
    %v155 = vld [vmem:[%s2] sm:$0xf]
    %v156 = vld [vmem:[%s2 + $0x4] sm:$0xf]
    %v157 = vld [vmem:[%s3] sm:$0xf]
    %v158 = vld [vmem:[%s3 + $0x4] sm:$0xf]
    %v159 = vld [vmem:[%s3 + $0x8] sm:$0xf]
    %v160 = vld [vmem:[%s3 + $0xc] sm:$0xf]
    %v161 = vld [vmem:[%s3 + $0x10] sm:$0xf]
    %v162 = vld [vmem:[%s3 + $0x14] sm:$0xf]
    %v163 = vld [vmem:[%s3 + $0x18] sm:$0xf]
    %v164 = vld [vmem:[%s3 + $0x1c] sm:$0xf]
    %v165 = vld [vmem:[%s3 + $0x20] sm:$0xf]
    %v166 = vld [vmem:[%s3 + $0x24] sm:$0xf]
    %v167 = vld [vmem:[%s3 + $0x28] sm:$0xf]
    %v168 = vld [vmem:[%s3 + $0x2c] sm:$0xf]
    %v169 = vld [vmem:[%s3 + $0x30] sm:$0xf]
    %v170 = vld [vmem:[%s3 + $0x34] sm:$0xf]
    %v171 = vld [vmem:[%s3 + $0x38] sm:$0xf]
    %v172 = vld [vmem:[%s3 + $0x3c] sm:$0xf]
    %v173 = vld [vmem:[%s4] sm:$0xf]
    %v174 = vld [vmem:[%s4 + $0x4] sm:$0xf]
    %v175 = vld [vmem:[%s4 + $0x8] sm:$0xf]
    %v176 = vld [vmem:[%s4 + $0xc] sm:$0xf]
    %v177 = vld [vmem:[%s4 + $0x10] sm:$0xf]
    %v178 = vld [vmem:[%s4 + $0x14] sm:$0xf]
    %v179 = vld [vmem:[%s4 + $0x18] sm:$0xf]
    %v180 = vld [vmem:[%s4 + $0x1c] sm:$0xf]
    %v181 = vld [vmem:[%s4 + $0x20] sm:$0xf]
    %v182 = vld [vmem:[%s4 + $0x24] sm:$0xf]
    %v183 = vld [vmem:[%s4 + $0x28] sm:$0xf]
    %v184 = vld [vmem:[%s4 + $0x2c] sm:$0xf]
    %v185 = vld [vmem:[%s4 + $0x30] sm:$0xf]
    %v186 = vld [vmem:[%s4 + $0x34] sm:$0xf]
    %v187 = vld [vmem:[%s4 + $0x38] sm:$0xf]
    %v188 = vld [vmem:[%s4 + $0x3c] sm:$0xf]
    %v205 = vunpack.c.l.b16 %v173
    %v206 = vunpack.c.l.b16 %v174
    %v207 = vunpack.c.l.b16 %v175
    %v208 = vunpack.c.l.b16 %v176
    %v209 = vunpack.c.l.b16 %v177
    %v210 = vunpack.c.l.b16 %v178
    %v211 = vunpack.c.l.b16 %v179
    %v212 = vunpack.c.l.b16 %v180
    %v213 = vunpack.c.l.b16 %v181
    %v214 = vunpack.c.l.b16 %v182
    %v215 = vunpack.c.l.b16 %v183
    %v216 = vunpack.c.l.b16 %v184
    %v217 = vunpack.c.l.b16 %v185
    %v218 = vunpack.c.l.b16 %v186
    %v219 = vunpack.c.l.b16 %v187
    %v220 = vunpack.c.l.b16 %v188
    %v221 = vpack.c.b16 %v206, %v205
    %v222 = vpack.c.b16 %v208, %v207
    %v223 = vpack.c.b16 %v210, %v209
    %v224 = vpack.c.b16 %v212, %v211
    %v225 = vpack.c.b16 %v214, %v213
    %v226 = vpack.c.b16 %v216, %v215
    %v227 = vpack.c.b16 %v218, %v217
    %v228 = vpack.c.b16 %v220, %v219
    %237 = vmatprep.subr.bf16.mxu0 0
    %238 = vmatpush1.bf16.msra.mxu0 %v221
    %239 = vmatprep.subr.bf16.mxu0 0
    %240 = vmatpush1.bf16.msra.mxu0 %v222
    %241 = vmatprep.subr.bf16.mxu0 0
    %242 = vmatpush1.bf16.msra.mxu0 %v223
    %243 = vmatprep.subr.bf16.mxu0 0
    %244 = vmatpush1.bf16.msra.mxu0 %v224
    %245 = vmatprep.subr.bf16.mxu0 0
    %246 = vmatpush1.bf16.msra.mxu0 %v225
    %247 = vmatprep.subr.bf16.mxu0 0
    %248 = vmatpush1.bf16.msra.mxu0 %v226
    %249 = vmatprep.subr.bf16.mxu0 0
    %250 = vmatpush1.bf16.msra.mxu0 %v227
    %251 = vmatprep.subr.bf16.mxu0 0
    %252 = vmatpush1.bf16.msra.mxu0 %v228
    %253 = vmatprep.subr.bf16.mxu0 0
    %254 = vmatpush1.bf16.msra.mxu0 0
    %255 = vmatprep.subr.bf16.mxu0 0
    %256 = vmatpush1.bf16.msra.mxu0 0
    %257 = vmatprep.subr.bf16.mxu0 0
    %258 = vmatpush1.bf16.msra.mxu0 0
    %259 = vmatprep.subr.bf16.mxu0 0
    %260 = vmatpush1.bf16.msra.mxu0 0
    %261 = vmatprep.subr.bf16.mxu0 0
    %262 = vmatpush1.bf16.msra.mxu0 0
    %263 = vmatprep.subr.bf16.mxu0 0
    %264 = vmatpush1.bf16.msra.mxu0 0
    %265 = vmatprep.subr.bf16.mxu0 0
    %266 = vmatpush1.bf16.msra.mxu0 0
    %267 = vmatprep.subr.bf16.mxu0 0
    %268 = vmatpush1.bf16.msra.mxu0 0
    %269 = vmatprep.mubr.bf16.mxu0 0
    %270 = vmatmul.mubr.bf16.gmra.mrb[0].mxu0 %v154
    %v271 = vpop.f32.mrb[0].mxu0
    %v272 = vadd.f32 0.0, %v271
    %v273 = vpop.f32.mrb[0].mxu0
    %v274 = vpop.f32.mrb[0].mxu0
    %v275 = vadd.f32 0.0, %v274
    %v276 = vpop.f32.mrb[0].mxu0
    %277 = vdwg.mxu0
    %v280 = vunpack.c.l.b16 %v155
    %v281 = vunpack.c.l.b16 %v156
    %v282 = vpack.c.b16 %v281, %v280
    %v300 = vunpack.c.l.b16 %v157
    %v301 = vunpack.c.l.b16 %v158
    %v302 = vunpack.c.l.b16 %v159
    %v303 = vunpack.c.l.b16 %v160
    %v304 = vunpack.c.l.b16 %v161
    %v305 = vunpack.c.l.b16 %v162
    %v306 = vunpack.c.l.b16 %v163
    %v307 = vunpack.c.l.b16 %v164
    %v308 = vunpack.c.l.b16 %v165
    %v309 = vunpack.c.l.b16 %v166
    %v310 = vunpack.c.l.b16 %v167
    %v311 = vunpack.c.l.b16 %v168
    %v312 = vunpack.c.l.b16 %v169
    %v313 = vunpack.c.l.b16 %v170
    %v314 = vunpack.c.l.b16 %v171
    %v315 = vunpack.c.l.b16 %v172
    %v316 = vpack.c.b16 %v301, %v300
    %v317 = vpack.c.b16 %v303, %v302
    %v318 = vpack.c.b16 %v305, %v304
    %v319 = vpack.c.b16 %v307, %v306
    %v320 = vpack.c.b16 %v309, %v308
    %v321 = vpack.c.b16 %v311, %v310
    %v322 = vpack.c.b16 %v313, %v312
    %v323 = vpack.c.b16 %v315, %v314
    %332 = vmatprep.subr.bf16.mxu0 0
    %333 = vmatpush1.bf16.msra.mxu0 %v316
    %334 = vmatprep.subr.bf16.mxu0 0
    %335 = vmatpush1.bf16.msra.mxu0 %v317
    %336 = vmatprep.subr.bf16.mxu0 0
    %337 = vmatpush1.bf16.msra.mxu0 %v318
    %338 = vmatprep.subr.bf16.mxu0 0
    %339 = vmatpush1.bf16.msra.mxu0 %v319
    %340 = vmatprep.subr.bf16.mxu0 0
    %341 = vmatpush1.bf16.msra.mxu0 %v320
    %342 = vmatprep.subr.bf16.mxu0 0
    %343 = vmatpush1.bf16.msra.mxu0 %v321
    %344 = vmatprep.subr.bf16.mxu0 0
    %345 = vmatpush1.bf16.msra.mxu0 %v322
    %346 = vmatprep.subr.bf16.mxu0 0
    %347 = vmatpush1.bf16.msra.mxu0 %v323
    %348 = vmatprep.subr.bf16.mxu0 0
    %349 = vmatpush1.bf16.msra.mxu0 0
    %350 = vmatprep.subr.bf16.mxu0 0
    %351 = vmatpush1.bf16.msra.mxu0 0
    %352 = vmatprep.subr.bf16.mxu0 0
    %353 = vmatpush1.bf16.msra.mxu0 0
    %354 = vmatprep.subr.bf16.mxu0 0
    %355 = vmatpush1.bf16.msra.mxu0 0
    %356 = vmatprep.subr.bf16.mxu0 0
    %357 = vmatpush1.bf16.msra.mxu0 0
    %358 = vmatprep.subr.bf16.mxu0 0
    %359 = vmatpush1.bf16.msra.mxu0 0
    %360 = vmatprep.subr.bf16.mxu0 0
    %361 = vmatpush1.bf16.msra.mxu0 0
    %362 = vmatprep.subr.bf16.mxu0 0
    %363 = vmatpush1.bf16.msra.mxu0 0
    %364 = vmatprep.mubr.bf16.mxu0 0
    %365 = vmatmul.mubr.bf16.gmra.mrb[0].mxu0 %v282
    %v366 = vpop.f32.mrb[0].mxu0
    %v367 = vadd.f32 %v272, %v366
    %v368 = vpop.f32.mrb[0].mxu0
    %v369 = vpop.f32.mrb[0].mxu0
    %v370 = vadd.f32 %v275, %v369
    %v371 = vpop.f32.mrb[0].mxu0
    %372 = vdwg.mxu0
    %v373 = vld [vmem:[%s5] sm:$0x1]
    %v375 = vlaneseq
    %v376 = vshrl.u32 %v375, 7
    %v377 = vsub.s32 0, %v376
    %v378 = vrot.slane %v373, %v377
    %v380 = vadd.f32 %v367, %v378
    %v381 = vadd.f32 %v370, %v378
    %v382 = vpack.c.bf16 %v381, %v380
    %v384 = vunpack.c.l.b16 %v382
    %v385 = vunpack.c.h.b16 %v382
    %v386 = vpack.c.b16 %v384, %v384
    %v387 = vpack.c.b16 %v385, %v385
    %390 = vst [vmem:[%s6] sm:$0xf] %v386
    %391 = vst [vmem:[%s6 + $0x4] sm:$0xf] %v387
  $region33: #{_forward_padded.5} parent=0 // pred_fallthru
    _
  // Predicated region
  $region34: #{_forward_padded.5} parent=0 // pred_check
    _
  $region35: #{_forward_padded.5} parent=0 // pred_check_branch
    %393 = sbr.rel (0) target = $region37
  $region36: #{_forward_padded.5} parent=0 // pred_region
    _
  $region37: #{_forward_padded.5} parent=0 // pred_fallthru
    _
  // Predicated region
  $region38: #{_forward_padded.5} parent=0 // pred_check
    _
  $region39: #{_forward_padded.5} parent=0 // pred_check_branch
    %395 = sbr.rel (0) target = $region41
  $region40: #{_forward_padded.5} parent=0 // pred_region
    _
  $region41: #{_forward_padded.5} parent=0 // pred_fallthru
    _

</llo_original>
